<compile_context>
chip_gen: v7x
topology: tpu7x:2x2x1
jax: 0.10.0
libtpu: 0.0.40
codegen_flags: <defaults>
</compile_context>

<pallas_src>
import functools

import jax
import jax.numpy as jnp
from jax.experimental import pallas as pl
from jax.experimental.pallas import tpu as pltpu


def encoder_kernel(ids_ref,                      # scalar prefetch: (B, S) int32, SMEM
                   tlen_ref,                     # scalar prefetch: (n_b,) int32, SMEM
                   mask_ref,                     # (tile_b, tile_s) f32, VMEM (pipelined)
                   emb_hbm,                      # (V, D) f32, memory_space=ANY (HBM)
                   wp_ref, bp_ref,               # pooler dense (D, D), (1, D)  VMEM-resident
                   w1_ref, b1_ref,               # mlp Linear 1  (D, H), (1, H)
                   w2_ref, b2_ref,               # mlp Linear 2  (H, H), (1, H)
                   out_ref,                      # (tile_b, H)
                   gather_buf,                   # VMEM (2, tile_b*tile_s, D) f32 (double buffer)
                   acc_ref,                      # VMEM (tile_b, D) f32  masked-sum accumulator
                   cnt_ref,                      # VMEM (tile_b, 1) f32  mask-count accumulator
                   dma_sems,                     # DMA semaphores, shape (2,): one per slot
                   *, tile_b, tile_s):
    bi = pl.program_id(0)            # batch tile   (parallel -> megacore sharded)
    si = pl.program_id(1)            # seq tile     (arbitrary, innermost)
    n_s = pl.num_programs(1)
    n_tok = tile_b * tile_s

    b0 = bi * tile_b
    blen = tlen_ref[bi]              # max valid length over rows of this batch tile

    def issue_gathers(s_tile, slot):
        """One embedding-row DMA per token of sequence tile `s_tile` into `slot`."""
        s_base = s_tile * tile_s

        @pl.loop(0, tile_b)
        def _rows(b):
            row = b0 + b
            t0 = b * tile_s                      # no div/mod on the scalar unit

            @pl.loop(0, tile_s)
            def _cols(s):
                tok = ids_ref[row, s_base + s]
                pltpu.make_async_copy(emb_hbm.at[tok],
                                      gather_buf.at[slot, t0 + s],
                                      dma_sems.at[slot]).start()

    # ---- init accumulators + prime slot 0 with this batch tile's first seq tile.
    @pl.when(si == 0)
    def _init():
        acc_ref[...] = jnp.zeros_like(acc_ref)
        cnt_ref[...] = jnp.zeros_like(cnt_ref)

        @pl.when(blen > 0)
        def _prime():
            issue_gathers(0, 0)

    cur = si % 2

    # ---- prefetch the NEXT sequence tile into the other slot; those DMAs fly
    #      while we drain + accumulate the current tile below.
    nxt = si + 1

    @pl.when(jnp.logical_and(nxt < n_s, nxt * tile_s < blen))
    def _prefetch_next():
        issue_gathers(nxt, 1 - cur)

    # ---- drain + accumulate the current tile; skipped entirely when every row
    #      of this batch tile is already past its valid length (padding skip).
    #      Issue and drain share the identical condition -> no leaked waits.
    @pl.when(si * tile_s < blen)
    def _consume():
        @pl.loop(0, n_tok)
        def _drain(t):
            pltpu.make_async_copy(emb_hbm.at[0], gather_buf.at[cur, t],
                                  dma_sems.at[cur]).wait()

        mask = mask_ref[...]                                      # (tile_b, tile_s)
        emb = gather_buf[cur].reshape(tile_b, tile_s, -1)         # (tile_b, tile_s, D)
        acc_ref[...] += jnp.sum(emb * mask[:, :, None], axis=1)   # (tile_b, D)
        cnt_ref[...] += jnp.sum(mask, axis=1, keepdims=True)      # (tile_b, 1)

    # ---- last sequence tile: finish pooling and run pooler + MLP projection.
    @pl.when(si == n_s - 1)
    def _finalize():
        denom = jnp.maximum(cnt_ref[...], 1.0)            # guard all-padding rows
        pooled = acc_ref[...] / denom
        pooler = jnp.tanh(
            jnp.dot(pooled, wp_ref[...], preferred_element_type=jnp.float32)
            + bp_ref[...])
        h = jnp.dot(pooler, w1_ref[...], preferred_element_type=jnp.float32) + b1_ref[...]
        h = jnp.maximum(h, 0.0)                           # ReLU
        out = jnp.dot(h, w2_ref[...], preferred_element_type=jnp.float32) + b2_ref[...]
        out_ref[...] = out.astype(out_ref.dtype)


def _default_vmem_limit_bytes():
    """Generation-aware VMEM request: 3/4 of per-core capacity, capped at 96 MiB
    (v7x has 64 MiB per TensorCore; v5e/v6e have 128 MiB)."""
    try:
        phys = int(pltpu.get_tpu_info().vmem_capacity_bytes)
    except Exception:                      # attribute/layout differences -> conservative
        phys = 64 * 1024 * 1024
    return min(phys * 3 // 4, 96 * 1024 * 1024)


def encoder_forward(input_ids, attention_mask, params, *,
                    tile_b=8, tile_s=128, vmem_limit_bytes=None):
    """input_ids: (B, S) int, attention_mask: (B, S) int/float -> (B, H) f32.

    Production tiling: tile_b = 128 (v5e) / 256 (v6e, v7x) to fill the MXU in
    the projection, with n_b = B // tile_b even (>= 2) so v7x's two TensorCores
    both get batch tiles; tile_s a multiple of 128 sized so the double-buffered
    gather scratch (2 * tile_b * tile_s * D * 4 bytes) fits per-core VMEM.
    """
    emb_table = params["emb_table"]                  # (V, D), stays in HBM
    B, S = input_ids.shape
    V, D = emb_table.shape
    H = params["w2"].shape[1]

    assert B % tile_b == 0 and S % tile_s == 0, "pad B/S to tile multiples"
    assert tile_b % 8 == 0, "tile_b must be a sublane multiple"
    assert tile_s % 128 == 0, "tile_s must be lane-dense (multiple of 128)"
    n_b, n_s = B // tile_b, S // tile_s

    ids = input_ids.astype(jnp.int32)
    mask = attention_mask.astype(jnp.float32)

    # Per-batch-tile max valid extent (robust to non-prefix masks): last nonzero
    # position + 1 per row, max over the rows of each batch tile.
    pos = jnp.arange(S, dtype=jnp.int32)[None, :]
    row_extent = jnp.max(jnp.where(attention_mask != 0, pos + 1, 0), axis=1)
    tile_len = jnp.max(row_extent.reshape(n_b, tile_b), axis=1).astype(jnp.int32)

    if vmem_limit_bytes is None:
        vmem_limit_bytes = _default_vmem_limit_bytes()

    kernel = functools.partial(encoder_kernel, tile_b=tile_b, tile_s=tile_s)

    vmem_resident = pl.BlockSpec(memory_space=pltpu.MemorySpace.VMEM)  # single buffer

    grid_spec = pltpu.PrefetchScalarGridSpec(
        num_scalar_prefetch=2,                       # input_ids, tile_len -> SMEM
        grid=(n_b, n_s),
        in_specs=[
            pl.BlockSpec((tile_b, tile_s), lambda i, s, ids, tl: (i, s)),  # mask (pipelined)
            pl.BlockSpec(memory_space=pl.ANY),                             # emb table (HBM)
            vmem_resident,                                                 # wp
            vmem_resident,                                                 # bp
            vmem_resident,                                                 # w1
            vmem_resident,                                                 # b1
            vmem_resident,                                                 # w2
            vmem_resident,                                                 # b2
        ],
        out_specs=pl.BlockSpec((tile_b, H), lambda i, s, ids, tl: (i, 0)),
        scratch_shapes=[
            pltpu.VMEM((2, tile_b * tile_s, D), jnp.float32),  # double-buffered gather
            pltpu.VMEM((tile_b, D), jnp.float32),              # masked-sum accumulator
            pltpu.VMEM((tile_b, 1), jnp.float32),              # mask-count accumulator
            pltpu.SemaphoreType.DMA((2,)),                     # one DMA sem per slot
        ],
    )

    return pl.pallas_call(
        kernel,
        out_shape=jax.ShapeDtypeStruct((B, H), jnp.float32),
        grid_spec=grid_spec,
        compiler_params=pltpu.CompilerParams(
            dimension_semantics=("parallel", "arbitrary"),
            vmem_limit_bytes=int(vmem_limit_bytes),
        ),
    )(ids, tile_len, mask,
      emb_table,
      params["wp"], params["bp"],
      params["w1"], params["b1"],
      params["w2"], params["b2"])


def make_params(key, vocab, dim, hidden):
    ks = jax.random.split(key, 7)
    scale = 0.02
    return {
        "emb_table": scale * jax.random.normal(ks[0], (vocab, dim), jnp.float32),
        # pooler dense (D -> D), stored (in, out)
        "wp": scale * jax.random.normal(ks[1], (dim, dim), jnp.float32),
        "bp": scale * jax.random.normal(ks[2], (1, dim), jnp.float32),
        # mlp_projection: Linear(dim, hidden) -> ReLU -> Linear(hidden, hidden)
        "w1": scale * jax.random.normal(ks[3], (dim, hidden), jnp.float32),
        "b1": scale * jax.random.normal(ks[4], (1, hidden), jnp.float32),
        "w2": scale * jax.random.normal(ks[5], (hidden, hidden), jnp.float32),
        "b2": scale * jax.random.normal(ks[6], (1, hidden), jnp.float32),
    }


def reference_forward(input_ids, attention_mask, params):
    emb = jnp.take(params["emb_table"], input_ids, axis=0).astype(jnp.float32)
    mask = attention_mask.astype(jnp.float32)
    denom = jnp.maximum(jnp.sum(mask, axis=1, keepdims=True), 1.0)
    pooled = jnp.sum(emb * mask[:, :, None], axis=1) / denom
    pooler = jnp.tanh(pooled @ params["wp"] + params["bp"])
    h = jnp.maximum(pooler @ params["w1"] + params["b1"], 0.0)
    return h @ params["w2"] + params["b2"]


if __name__ == "__main__":
    B, S, V = 16, 256, 64       # batch, seq, vocab
    D, H = 128, 128             # dimension_size, hidden_size

    key = jax.random.PRNGKey(0)
    k_param, k_ids = jax.random.split(key)
    params = make_params(k_param, V, D, H)

    input_ids = jax.random.randint(k_ids, (B, S), 0, V, dtype=jnp.int32)
    # Variable-length valid prefixes: first batch tile is short (exercises the
    # padding-skip path for its second sequence tile), second tile spans S.
    lengths = jnp.concatenate([3 + jnp.arange(8, dtype=jnp.int32),
                               32 * (jnp.arange(8, dtype=jnp.int32) + 1)])
    attention_mask = (jnp.arange(S)[None, :] < lengths[:, None]).astype(jnp.int32)

    out = encoder_forward(input_ids, attention_mask, params, tile_b=8, tile_s=128)
    out = jax.block_until_ready(out)

    ref = reference_forward(input_ids, attention_mask, params)
    assert out.shape == (B, H)
    assert jnp.allclose(out, ref, atol=1e-4, rtol=1e-4), "mismatch vs JAX reference"

    print("KERNEL_OK")
</pallas_src>

<mosaic_0001>
module attributes {stable_mosaic.version = 11 : i64} {
  func.func @encoder_kernel(%arg0: i32, %arg1: i32, %arg2: memref<16x256xi32, #tpu.memory_space<smem>>, %arg3: memref<2xi32, #tpu.memory_space<smem>>, %arg4: memref<8x128xf32, #tpu.memory_space<vmem>>, %arg5: memref<64x128xf32, #tpu.memory_space<any>>, %arg6: memref<128x128xf32, #tpu.memory_space<vmem>>, %arg7: memref<1x128xf32, #tpu.memory_space<vmem>>, %arg8: memref<128x128xf32, #tpu.memory_space<vmem>>, %arg9: memref<1x128xf32, #tpu.memory_space<vmem>>, %arg10: memref<128x128xf32, #tpu.memory_space<vmem>>, %arg11: memref<1x128xf32, #tpu.memory_space<vmem>>, %arg12: memref<8x128xf32, #tpu.memory_space<vmem>>, %arg13: memref<2x1024x128xf32, #tpu.memory_space<vmem>>, %arg14: memref<8x128xf32, #tpu.memory_space<vmem>>, %arg15: memref<8x1xf32, #tpu.memory_space<vmem>>, %arg16: memref<2x!tpu.dma_semaphore, #tpu.memory_space<semaphore_mem>>) attributes {dimension_semantics = [#tpu.dimension_semantics<parallel>, #tpu.dimension_semantics<arbitrary>], iteration_bounds = array<i64: 2, 2>, scalar_prefetch = 2 : i64, scratch_operands = 4 : i64, tpu.core_type = #tpu.core_type<tc>, window_params = [{transform_indices = @transform_0, window_bounds = array<i64: 8, 128>}, {}, {pipeline_mode = #tpu.pipeline_mode<synchronous>, transform_indices = @transform_2, window_bounds = array<i64: 128, 128>}, {pipeline_mode = #tpu.pipeline_mode<synchronous>, transform_indices = @transform_3, window_bounds = array<i64: 1, 128>}, {pipeline_mode = #tpu.pipeline_mode<synchronous>, transform_indices = @transform_4, window_bounds = array<i64: 128, 128>}, {pipeline_mode = #tpu.pipeline_mode<synchronous>, transform_indices = @transform_5, window_bounds = array<i64: 1, 128>}, {pipeline_mode = #tpu.pipeline_mode<synchronous>, transform_indices = @transform_6, window_bounds = array<i64: 128, 128>}, {pipeline_mode = #tpu.pipeline_mode<synchronous>, transform_indices = @transform_7, window_bounds = array<i64: 1, 128>}, {transform_indices = @transform_8, window_bounds = array<i64: 8, 128>}]} {
    %c8_i32 = arith.constant 8 : i32
    %0 = arith.muli %arg0, %c8_i32 : i32
    %1 = arith.index_cast %arg0 : i32 to index
    %2 = memref.load %arg3[%1] : memref<2xi32, #tpu.memory_space<smem>>
    %c0_i32 = arith.constant 0 : i32
    %3 = arith.cmpi eq, %arg1, %c0_i32 : i32
    %4 = arith.extui %3 : i1 to i32
    %c0_i32_0 = arith.constant 0 : i32
    %5 = arith.cmpi ne, %4, %c0_i32_0 : i32
    scf.if %5 {
      %cst = arith.constant 0.000000e+00 : f32
      %30 = vector.broadcast %cst : f32 to vector<8x128xf32>
      %c0 = arith.constant 0 : index
      %c0_12 = arith.constant 0 : index
      %31 = vector.load %arg14[%c0, %c0_12] : memref<8x128xf32, #tpu.memory_space<vmem>>, vector<8x128xf32>
      tpu.vector_store %arg14[%c0, %c0_12], %30 {strides = array<i32>} : memref<8x128xf32, #tpu.memory_space<vmem>>, vector<8x128xf32>,
      %cst_13 = arith.constant 0.000000e+00 : f32
      %32 = vector.broadcast %cst_13 : f32 to vector<8x1xf32>
      %c0_14 = arith.constant 0 : index
      %c0_15 = arith.constant 0 : index
      %33 = vector.load %arg15[%c0_14, %c0_15] : memref<8x1xf32, #tpu.memory_space<vmem>>, vector<8x1xf32>
      tpu.vector_store %arg15[%c0_14, %c0_15], %32 {strides = array<i32>} : memref<8x1xf32, #tpu.memory_space<vmem>>, vector<8x1xf32>,
      %c0_i32_16 = arith.constant 0 : i32
      %34 = arith.cmpi sgt, %2, %c0_i32_16 : i32
      %35 = arith.extui %34 : i1 to i32
      %c0_i32_17 = arith.constant 0 : i32
      %36 = arith.cmpi ne, %35, %c0_i32_17 : i32
      scf.if %36 {
        %c0_i32_18 = arith.constant 0 : i32
        %c8_i32_19 = arith.constant 8 : i32
        %37 = arith.addi %c0_i32_18, %c8_i32_19 : i32
        %c1_i32_20 = arith.constant 1 : i32
        scf.for %arg17 = %c0_i32_18 to %37 step %c1_i32_20  : i32 {
          %c1_i32_22 = arith.constant 1 : i32
          %38 = arith.muli %arg17, %c1_i32_22 : i32
          %c0_i32_23 = arith.constant 0 : i32
          %39 = arith.addi %c0_i32_23, %38 : i32
          %40 = arith.addi %0, %39 : i32
          %c128_i32_24 = arith.constant 128 : i32
          %41 = arith.muli %39, %c128_i32_24 : i32
          %c0_i32_25 = arith.constant 0 : i32
          %c128_i32_26 = arith.constant 128 : i32
          %42 = arith.addi %c0_i32_25, %c128_i32_26 : i32
          %c1_i32_27 = arith.constant 1 : i32
          scf.for %arg18 = %c0_i32_25 to %42 step %c1_i32_27  : i32 {
            %c1_i32_29 = arith.constant 1 : i32
            %43 = arith.muli %arg18, %c1_i32_29 : i32
            %c0_i32_30 = arith.constant 0 : i32
            %44 = arith.addi %c0_i32_30, %43 : i32
            %c0_i32_31 = arith.constant 0 : i32
            %45 = arith.addi %c0_i32_31, %44 : i32
            %46 = arith.index_cast %40 : i32 to index
            %47 = arith.index_cast %45 : i32 to index
            %48 = memref.load %arg2[%46, %47] : memref<16x256xi32, #tpu.memory_space<smem>>
            %49 = arith.addi %41, %44 : i32
            %c0_i32_32 = arith.constant 0 : i32
            %c0_i32_33 = arith.constant 0 : i32
            %c0_i32_34 = arith.constant 0 : i32
            %50 = tpu.memref_slice %arg5[%48, %c0_i32_34] : memref<64x128xf32, #tpu.memory_space<any>> -> memref<1x128xf32, #tpu.memory_space<any>>
            %51 = tpu.memref_squeeze %50 : memref<1x128xf32, #tpu.memory_space<any>> -> memref<128xf32, #tpu.memory_space<any>>
            %c0_i32_35 = arith.constant 0 : i32
            %52 = tpu.memref_slice %arg13[%c0_i32_32, %49, %c0_i32_35] : memref<2x1024x128xf32, #tpu.memory_space<vmem>> -> memref<1x1x128xf32, #tpu.memory_space<vmem>>
            %53 = tpu.memref_squeeze %52 : memref<1x1x128xf32, #tpu.memory_space<vmem>> -> memref<128xf32, #tpu.memory_space<vmem>>
            %54 = tpu.memref_slice %arg16[%c0_i32_33] : memref<2x!tpu.dma_semaphore, #tpu.memory_space<semaphore_mem>> -> memref<1x!tpu.dma_semaphore, #tpu.memory_space<semaphore_mem>>
            %55 = tpu.memref_squeeze %54 : memref<1x!tpu.dma_semaphore, #tpu.memory_space<semaphore_mem>> -> memref<!tpu.dma_semaphore, #tpu.memory_space<semaphore_mem>>
            tpu.enqueue_dma source(%51 : memref<128xf32, #tpu.memory_space<any>>) target(%53 : memref<128xf32, #tpu.memory_space<vmem>>) target_semaphore(%55 : memref<!tpu.dma_semaphore, #tpu.memory_space<semaphore_mem>>)
          }
          %c128_i32_28 = arith.constant 128 : i32
        }
        %c8_i32_21 = arith.constant 8 : i32
      } else {
      }
    } else {
    }
    %c2_i32 = arith.constant 2 : i32
    %c0_i32_1 = arith.constant 0 : i32
    %6 = arith.cmpi eq, %c2_i32, %c0_i32_1 : i32
    %c1_i32 = arith.constant 1 : i32
    %7 = arith.select %6, %c1_i32, %c2_i32 : i32
    %8 = arith.remsi %arg1, %7 : i32
    %c0_i32_2 = arith.constant 0 : i32
    %9 = arith.cmpi ne, %8, %c0_i32_2 : i32
    %c0_i32_3 = arith.constant 0 : i32
    %10 = arith.cmpi slt, %8, %c0_i32_3 : i32
    %c0_i32_4 = arith.constant 0 : i32
    %11 = arith.cmpi slt, %7, %c0_i32_4 : i32
    %12 = arith.xori %10, %11 : i1
    %13 = arith.andi %12, %9 : i1
    %14 = arith.addi %8, %7 : i32
    %15 = arith.select %13, %14, %8 : i32
    %c1_i32_5 = arith.constant 1 : i32
    %16 = arith.addi %arg1, %c1_i32_5 : i32
    %c2_i32_6 = arith.constant 2 : i32
    %17 = arith.cmpi slt, %16, %c2_i32_6 : i32
    %c128_i32 = arith.constant 128 : i32
    %18 = arith.muli %16, %c128_i32 : i32
    %19 = arith.cmpi slt, %18, %2 : i32
    %20 = arith.andi %17, %19 : i1
    %21 = arith.extui %20 : i1 to i32
    %c0_i32_7 = arith.constant 0 : i32
    %22 = arith.cmpi ne, %21, %c0_i32_7 : i32
    scf.if %22 {
      %c1_i32_12 = arith.constant 1 : i32
      %30 = arith.subi %c1_i32_12, %15 : i32
      %c128_i32_13 = arith.constant 128 : i32
      %31 = arith.muli %16, %c128_i32_13 : i32
      %c0_i32_14 = arith.constant 0 : i32
      %c8_i32_15 = arith.constant 8 : i32
      %32 = arith.addi %c0_i32_14, %c8_i32_15 : i32
      %c1_i32_16 = arith.constant 1 : i32
      scf.for %arg17 = %c0_i32_14 to %32 step %c1_i32_16  : i32 {
        %c1_i32_18 = arith.constant 1 : i32
        %33 = arith.muli %arg17, %c1_i32_18 : i32
        %c0_i32_19 = arith.constant 0 : i32
        %34 = arith.addi %c0_i32_19, %33 : i32
        %35 = arith.addi %0, %34 : i32
        %c128_i32_20 = arith.constant 128 : i32
        %36 = arith.muli %34, %c128_i32_20 : i32
        %c0_i32_21 = arith.constant 0 : i32
        %c128_i32_22 = arith.constant 128 : i32
        %37 = arith.addi %c0_i32_21, %c128_i32_22 : i32
        %c1_i32_23 = arith.constant 1 : i32
        scf.for %arg18 = %c0_i32_21 to %37 step %c1_i32_23  : i32 {
          %c1_i32_25 = arith.constant 1 : i32
          %38 = arith.muli %arg18, %c1_i32_25 : i32
          %c0_i32_26 = arith.constant 0 : i32
          %39 = arith.addi %c0_i32_26, %38 : i32
          %40 = arith.addi %31, %39 : i32
          %41 = arith.index_cast %35 : i32 to index
          %42 = arith.index_cast %40 : i32 to index
          %43 = memref.load %arg2[%41, %42] : memref<16x256xi32, #tpu.memory_space<smem>>
          %44 = arith.addi %36, %39 : i32
          %c0_i32_27 = arith.constant 0 : i32
          %45 = tpu.memref_slice %arg5[%43, %c0_i32_27] : memref<64x128xf32, #tpu.memory_space<any>> -> memref<1x128xf32, #tpu.memory_space<any>>
          %46 = tpu.memref_squeeze %45 : memref<1x128xf32, #tpu.memory_space<any>> -> memref<128xf32, #tpu.memory_space<any>>
          %c0_i32_28 = arith.constant 0 : i32
          %47 = tpu.memref_slice %arg13[%30, %44, %c0_i32_28] : memref<2x1024x128xf32, #tpu.memory_space<vmem>> -> memref<1x1x128xf32, #tpu.memory_space<vmem>>
          %48 = tpu.memref_squeeze %47 : memref<1x1x128xf32, #tpu.memory_space<vmem>> -> memref<128xf32, #tpu.memory_space<vmem>>
          %49 = tpu.memref_slice %arg16[%30] : memref<2x!tpu.dma_semaphore, #tpu.memory_space<semaphore_mem>> -> memref<1x!tpu.dma_semaphore, #tpu.memory_space<semaphore_mem>>
          %50 = tpu.memref_squeeze %49 : memref<1x!tpu.dma_semaphore, #tpu.memory_space<semaphore_mem>> -> memref<!tpu.dma_semaphore, #tpu.memory_space<semaphore_mem>>
          tpu.enqueue_dma source(%46 : memref<128xf32, #tpu.memory_space<any>>) target(%48 : memref<128xf32, #tpu.memory_space<vmem>>) target_semaphore(%50 : memref<!tpu.dma_semaphore, #tpu.memory_space<semaphore_mem>>)
        }
        %c128_i32_24 = arith.constant 128 : i32
      }
      %c8_i32_17 = arith.constant 8 : i32
    } else {
    }
    %c128_i32_8 = arith.constant 128 : i32
    %23 = arith.muli %arg1, %c128_i32_8 : i32
    %24 = arith.cmpi slt, %23, %2 : i32
    %25 = arith.extui %24 : i1 to i32
    %c0_i32_9 = arith.constant 0 : i32
    %26 = arith.cmpi ne, %25, %c0_i32_9 : i32
    scf.if %26 {
      %c0_i32_12 = arith.constant 0 : i32
      %c1024_i32 = arith.constant 1024 : i32
      %30 = arith.addi %c0_i32_12, %c1024_i32 : i32
      %c1_i32_13 = arith.constant 1 : i32
      scf.for %arg17 = %c0_i32_12 to %30 step %c1_i32_13  : i32 {
        %c1_i32_27 = arith.constant 1 : i32
        %48 = arith.muli %arg17, %c1_i32_27 : i32
        %c0_i32_28 = arith.constant 0 : i32
        %49 = arith.addi %c0_i32_28, %48 : i32
        %c0_i32_29 = arith.constant 0 : i32
        %c0_i32_30 = arith.constant 0 : i32
        %50 = tpu.memref_slice %arg5[%c0_i32_29, %c0_i32_30] : memref<64x128xf32, #tpu.memory_space<any>> -> memref<1x128xf32, #tpu.memory_space<any>>
        %51 = tpu.memref_squeeze %50 : memref<1x128xf32, #tpu.memory_space<any>> -> memref<128xf32, #tpu.memory_space<any>>
        %c0_i32_31 = arith.constant 0 : i32
        %52 = tpu.memref_slice %arg13[%15, %49, %c0_i32_31] : memref<2x1024x128xf32, #tpu.memory_space<vmem>> -> memref<1x1x128xf32, #tpu.memory_space<vmem>>
        %53 = tpu.memref_squeeze %52 : memref<1x1x128xf32, #tpu.memory_space<vmem>> -> memref<128xf32, #tpu.memory_space<vmem>>
        %54 = tpu.memref_slice %arg16[%15] : memref<2x!tpu.dma_semaphore, #tpu.memory_space<semaphore_mem>> -> memref<1x!tpu.dma_semaphore, #tpu.memory_space<semaphore_mem>>
        %55 = tpu.memref_squeeze %54 : memref<1x!tpu.dma_semaphore, #tpu.memory_space<semaphore_mem>> -> memref<!tpu.dma_semaphore, #tpu.memory_space<semaphore_mem>>
        tpu.wait_dma2 semaphore(%55 : memref<!tpu.dma_semaphore, #tpu.memory_space<semaphore_mem>>) src(%51 : memref<128xf32, #tpu.memory_space<any>>) dst(%53 : memref<128xf32, #tpu.memory_space<vmem>>)
      }
      %c1024_i32_14 = arith.constant 1024 : i32
      %c0 = arith.constant 0 : index
      %c0_15 = arith.constant 0 : index
      %31 = vector.load %arg4[%c0, %c0_15] : memref<8x128xf32, #tpu.memory_space<vmem>>, vector<8x128xf32>
      %32 = arith.index_cast %15 : i32 to index
      %c0_16 = arith.constant 0 : index
      %c0_17 = arith.constant 0 : index
      %33 = vector.load %arg13[%32, %c0_16, %c0_17] : memref<2x1024x128xf32, #tpu.memory_space<vmem>>, vector<1x1024x128xf32>
      %34 = vector.shape_cast %33 : vector<1x1024x128xf32> to vector<1024x128xf32>
      %35 = vector.shape_cast %34 : vector<1024x128xf32> to vector<8x128x128xf32>
      %c0_18 = arith.constant 0 : index
      %c0_19 = arith.constant 0 : index
      %36 = vector.load %arg14[%c0_18, %c0_19] : memref<8x128xf32, #tpu.memory_space<vmem>>, vector<8x128xf32>
      %37 = vector.shape_cast %31 : vector<8x128xf32> to vector<8x128x1xf32>
      %38 = vector.broadcast %37 : vector<8x128x1xf32> to vector<8x128x128xf32>
      %39 = arith.mulf %35, %38 : vector<8x128x128xf32>
      %cst = arith.constant dense<0.000000e+00> : vector<8x128xf32>
      %40 = vector.multi_reduction <add>, %39, %cst [1] : vector<8x128x128xf32> to vector<8x128xf32>
      %41 = arith.addf %36, %40 : vector<8x128xf32>
      %c0_20 = arith.constant 0 : index
      %c0_21 = arith.constant 0 : index
      %42 = vector.load %arg14[%c0_20, %c0_21] : memref<8x128xf32, #tpu.memory_space<vmem>>, vector<8x128xf32>
      tpu.vector_store %arg14[%c0_20, %c0_21], %41 {strides = array<i32>} : memref<8x128xf32, #tpu.memory_space<vmem>>, vector<8x128xf32>,
      %c0_22 = arith.constant 0 : index
      %c0_23 = arith.constant 0 : index
      %43 = vector.load %arg15[%c0_22, %c0_23] : memref<8x1xf32, #tpu.memory_space<vmem>>, vector<8x1xf32>
      %cst_24 = arith.constant dense<0.000000e+00> : vector<8xf32>
      %44 = vector.multi_reduction <add>, %31, %cst_24 [1] : vector<8x128xf32> to vector<8xf32>
      %45 = vector.shape_cast %44 : vector<8xf32> to vector<8x1xf32>
      %46 = arith.addf %43, %45 : vector<8x1xf32>
      %c0_25 = arith.constant 0 : index
      %c0_26 = arith.constant 0 : index
      %47 = vector.load %arg15[%c0_25, %c0_26] : memref<8x1xf32, #tpu.memory_space<vmem>>, vector<8x1xf32>
      tpu.vector_store %arg15[%c0_25, %c0_26], %46 {strides = array<i32>} : memref<8x1xf32, #tpu.memory_space<vmem>>, vector<8x1xf32>,
    } else {
    }
    %c1_i32_10 = arith.constant 1 : i32
    %27 = arith.cmpi eq, %arg1, %c1_i32_10 : i32
    %28 = arith.extui %27 : i1 to i32
    %c0_i32_11 = arith.constant 0 : i32
    %29 = arith.cmpi ne, %28, %c0_i32_11 : i32
    scf.if %29 {
      %c0 = arith.constant 0 : index
      %c0_12 = arith.constant 0 : index
      %30 = vector.load %arg15[%c0, %c0_12] : memref<8x1xf32, #tpu.memory_space<vmem>>, vector<8x1xf32>
      %cst = arith.constant 1.000000e+00 : f32
      %31 = vector.broadcast %cst : f32 to vector<8x1xf32>
      %32 = arith.maximumf %30, %31 : vector<8x1xf32>
      %c0_13 = arith.constant 0 : index
      %c0_14 = arith.constant 0 : index
      %33 = vector.load %arg14[%c0_13, %c0_14] : memref<8x128xf32, #tpu.memory_space<vmem>>, vector<8x128xf32>
      %34 = vector.broadcast %32 : vector<8x1xf32> to vector<8x128xf32>
      %35 = arith.divf %33, %34 : vector<8x128xf32>
      %c0_15 = arith.constant 0 : index
      %c0_16 = arith.constant 0 : index
      %36 = vector.load %arg6[%c0_15, %c0_16] : memref<128x128xf32, #tpu.memory_space<vmem>>, vector<128x128xf32>
      %cst_17 = arith.constant dense<0.000000e+00> : vector<8x128xf32>
      %37 = tpu.matmul %35, %36, %cst_17 {dimension_numbers = #tpu.dot_dimension_numbers<[1], [0], [0], [1], [0, 0, 1, 1], [], []>} : vector<8x128xf32>, vector<128x128xf32>, vector<8x128xf32> -> vector<8x128xf32>
      %c0_18 = arith.constant 0 : index
      %c0_19 = arith.constant 0 : index
      %38 = vector.load %arg7[%c0_18, %c0_19] : memref<1x128xf32, #tpu.memory_space<vmem>>, vector<1x128xf32>
      %39 = vector.broadcast %38 : vector<1x128xf32> to vector<8x128xf32>
      %40 = arith.addf %37, %39 : vector<8x128xf32>
      %41 = math.tanh %40 : vector<8x128xf32>
      %c0_20 = arith.constant 0 : index
      %c0_21 = arith.constant 0 : index
      %42 = vector.load %arg8[%c0_20, %c0_21] : memref<128x128xf32, #tpu.memory_space<vmem>>, vector<128x128xf32>
      %cst_22 = arith.constant dense<0.000000e+00> : vector<8x128xf32>
      %43 = tpu.matmul %41, %42, %cst_22 {dimension_numbers = #tpu.dot_dimension_numbers<[1], [0], [0], [1], [0, 0, 1, 1], [], []>} : vector<8x128xf32>, vector<128x128xf32>, vector<8x128xf32> -> vector<8x128xf32>
      %c0_23 = arith.constant 0 : index
      %c0_24 = arith.constant 0 : index
      %44 = vector.load %arg9[%c0_23, %c0_24] : memref<1x128xf32, #tpu.memory_space<vmem>>, vector<1x128xf32>
      %45 = vector.broadcast %44 : vector<1x128xf32> to vector<8x128xf32>
      %46 = arith.addf %43, %45 : vector<8x128xf32>
      %cst_25 = arith.constant 0.000000e+00 : f32
      %47 = vector.broadcast %cst_25 : f32 to vector<8x128xf32>
      %48 = arith.maximumf %46, %47 : vector<8x128xf32>
      %c0_26 = arith.constant 0 : index
      %c0_27 = arith.constant 0 : index
      %49 = vector.load %arg10[%c0_26, %c0_27] : memref<128x128xf32, #tpu.memory_space<vmem>>, vector<128x128xf32>
      %cst_28 = arith.constant dense<0.000000e+00> : vector<8x128xf32>
      %50 = tpu.matmul %48, %49, %cst_28 {dimension_numbers = #tpu.dot_dimension_numbers<[1], [0], [0], [1], [0, 0, 1, 1], [], []>} : vector<8x128xf32>, vector<128x128xf32>, vector<8x128xf32> -> vector<8x128xf32>
      %c0_29 = arith.constant 0 : index
      %c0_30 = arith.constant 0 : index
      %51 = vector.load %arg11[%c0_29, %c0_30] : memref<1x128xf32, #tpu.memory_space<vmem>>, vector<1x128xf32>
      %52 = vector.broadcast %51 : vector<1x128xf32> to vector<8x128xf32>
      %53 = arith.addf %50, %52 : vector<8x128xf32>
      %c0_31 = arith.constant 0 : index
      %c0_32 = arith.constant 0 : index
      %54 = vector.load %arg12[%c0_31, %c0_32] : memref<8x128xf32, #tpu.memory_space<vmem>>, vector<8x128xf32>
      tpu.vector_store %arg12[%c0_31, %c0_32], %53 {strides = array<i32>} : memref<8x128xf32, #tpu.memory_space<vmem>>, vector<8x128xf32>,
    } else {
    }
    return
  }
  func.func @transform_0(%arg0: i32, %arg1: i32, %arg2: memref<16x256xi32, #tpu.memory_space<smem>>, %arg3: memref<2xi32, #tpu.memory_space<smem>>) -> (i32, i32) {
    %c0_i32 = arith.constant 0 : i32
    return %arg0, %arg1 : i32, i32
  }
  func.func @transform_2(%arg0: i32, %arg1: i32, %arg2: memref<16x256xi32, #tpu.memory_space<smem>>, %arg3: memref<2xi32, #tpu.memory_space<smem>>) -> (i32, i32) {
    %c0_i32 = arith.constant 0 : i32
    %c0_i32_0 = arith.constant 0 : i32
    %c0_i32_1 = arith.constant 0 : i32
    return %c0_i32, %c0_i32_0 : i32, i32
  }
  func.func @transform_3(%arg0: i32, %arg1: i32, %arg2: memref<16x256xi32, #tpu.memory_space<smem>>, %arg3: memref<2xi32, #tpu.memory_space<smem>>) -> (i32, i32) {
    %c0_i32 = arith.constant 0 : i32
    %c0_i32_0 = arith.constant 0 : i32
    %c0_i32_1 = arith.constant 0 : i32
    return %c0_i32, %c0_i32_0 : i32, i32
  }
  func.func @transform_4(%arg0: i32, %arg1: i32, %arg2: memref<16x256xi32, #tpu.memory_space<smem>>, %arg3: memref<2xi32, #tpu.memory_space<smem>>) -> (i32, i32) {
    %c0_i32 = arith.constant 0 : i32
    %c0_i32_0 = arith.constant 0 : i32
    %c0_i32_1 = arith.constant 0 : i32
    return %c0_i32, %c0_i32_0 : i32, i32
  }
  func.func @transform_5(%arg0: i32, %arg1: i32, %arg2: memref<16x256xi32, #tpu.memory_space<smem>>, %arg3: memref<2xi32, #tpu.memory_space<smem>>) -> (i32, i32) {
    %c0_i32 = arith.constant 0 : i32
    %c0_i32_0 = arith.constant 0 : i32
    %c0_i32_1 = arith.constant 0 : i32
    return %c0_i32, %c0_i32_0 : i32, i32
  }
  func.func @transform_6(%arg0: i32, %arg1: i32, %arg2: memref<16x256xi32, #tpu.memory_space<smem>>, %arg3: memref<2xi32, #tpu.memory_space<smem>>) -> (i32, i32) {
    %c0_i32 = arith.constant 0 : i32
    %c0_i32_0 = arith.constant 0 : i32
    %c0_i32_1 = arith.constant 0 : i32
    return %c0_i32, %c0_i32_0 : i32, i32
  }
  func.func @transform_7(%arg0: i32, %arg1: i32, %arg2: memref<16x256xi32, #tpu.memory_space<smem>>, %arg3: memref<2xi32, #tpu.memory_space<smem>>) -> (i32, i32) {
    %c0_i32 = arith.constant 0 : i32
    %c0_i32_0 = arith.constant 0 : i32
    %c0_i32_1 = arith.constant 0 : i32
    return %c0_i32, %c0_i32_0 : i32, i32
  }
  func.func @transform_8(%arg0: i32, %arg1: i32, %arg2: memref<16x256xi32, #tpu.memory_space<smem>>, %arg3: memref<2xi32, #tpu.memory_space<smem>>) -> (i32, i32) {
    %c0_i32 = arith.constant 0 : i32
    %c0_i32_0 = arith.constant 0 : i32
    return %arg0, %c0_i32 : i32, i32
  }
}

</mosaic_0001>

<llo_original>
// kernel: tpu_custom_call.1
$region0: #{tpu_custom_call.1}
  #allocation0 [shape = 'u32[]', space=smem, size = 0x4, offset = 0x4, fixed_abs, tag = 'smem constant byte address 0x4 - core index']
  #allocation1 [shape = 'u32[144,128]{1,0:T(1,128)}', space=vmem, size = 0x12000, scoped, tag = 'internal scratch']
  #allocation2 [shape = 'f32[2,1024,128]{2,1,0:T(8,128)}', space=vmem, size = 0x100000, scoped, tag = 'scratch operand']
  #allocation3 [shape = 'f32[8,128]{1,0:T(8,128)}', space=vmem, size = 0x1000, scoped, tag = 'scratch operand']
  #allocation4 [shape = 'f32[8,1]{1,0:T(8,128)}', space=vmem, size = 0x1000, scoped, tag = 'scratch operand']
  #allocation5 [shape = 's32[2]{0}', space=sflag, size = 0x8, scoped, tag = 'scratch operand']
  #allocation6 [shape = 's32[1]{0}', space=sflag, size = 0x4, scoped, tag = 'scoped memory for tpu_custom_call.1']
  #allocation7 [shape = 'u8[16384]{0}', space=smem, size = 0x4000, scoped, tag = 'prefetched SMEM operand 0']
  #allocation8 [shape = 'u8[512]{0}', space=smem, size = 0x200, scoped, tag = 'prefetched SMEM operand 1']
  #allocation18 [shape = 's32[]', space=sflag, size = 0x4, offset = 0, fixed_abs, tag = 'sflag constant byte address 0x0 - dummy sync flag']
  #allocation19 [shape = 's32[]', space=sflag, size = 0x4, offset = 0, fixed_abs, tag = 'sflag constant byte address 0x0 - dummy sync flag']
  #allocation20 [shape = 'u32[]', space=smem, size = 0x4, offset = 0x44, fixed_abs, tag = 'smem constant byte address 0x44 - assertion arg 0']
  #allocation21 [shape = 'u32[]', space=smem, size = 0x4, offset = 0x48, fixed_abs, tag = 'smem constant byte address 0x48 - assertion arg 1']
  #allocation22 [shape = 's32[]', space=sflag, size = 0x4, offset = 0, fixed_abs, tag = 'sflag constant byte address 0x0 - dummy sync flag']
  #allocation23 [shape = 's32[]', space=sflag, size = 0x4, offset = 0, fixed_abs, tag = 'sflag constant byte address 0x0 - dummy sync flag']
  %s0 = inlined_call_operand.hbm [shape: s32[16,256], index: 0, kind: input, shape index: {}]
  %s1 = inlined_call_operand.vmem [shape: s32[2], index: 1, kind: input, shape index: {}]
  %s2 = inlined_call_operand.hbm [shape: f32[16,256], index: 2, kind: input, shape index: {}]
  %s3 = inlined_call_operand.hbm [shape: f32[64,128], index: 3, kind: input, shape index: {}]
  %s4 = inlined_call_operand.hbm [shape: f32[128,128], index: 4, kind: input, shape index: {}]
  %s5 = inlined_call_operand.vmem [shape: f32[1,128], index: 5, kind: input, shape index: {}]
  %s6 = inlined_call_operand.hbm [shape: f32[128,128], index: 6, kind: input, shape index: {}]
  %s7 = inlined_call_operand.vmem [shape: f32[1,128], index: 7, kind: input, shape index: {}]
  %s8 = inlined_call_operand.hbm [shape: f32[128,128], index: 8, kind: input, shape index: {}]
  %s9 = inlined_call_operand.vmem [shape: f32[1,128], index: 9, kind: input, shape index: {}]
  %s10 = inlined_call_operand.hbm [shape: f32[16,128], index: 10, kind: output, shape index: {}]
  %s11 = sld [smem:[#allocation0]]
  $region140: #{tpu_custom_call.1} parent=0
    _
  %s13 = ssub.s32 1, %s11
  %s14 = scalar_select 0, %s13, %s11
  %16 = dma.hbm_to_smem %s0, 512, [#allocation7], [#allocation6]
  %s17 = sshll.u32 %s1, 4
  %s18 = int_to_ptr.vmem [resolvable:$true] %s17
  %20 = dma.vmem_to_smem %s18, 16, [#allocation8], [#allocation6]
  %21 = dma.done [#allocation6], 528
  %22 = sfence
  $region1: #{tpu_custom_call.1} parent=0
    #allocation9 [shape = 'u8[8192]{0}', space=vmem, size = 0x2000, scoped, tag = 'input window, operand 2']
    #allocation10 [shape = 's32[2]{0}', space=sflag, size = 0x8, scoped, tag = 'scoped memory for tpu_custom_call.1']
    #allocation11 [shape = 's32[2]{0}', space=sflag, size = 0x8, scoped, tag = 'scoped memory for tpu_custom_call.1']
    #allocation12 [shape = 'u8[65536]{0}', space=vmem, size = 0x10000, scoped, tag = 'input window, operand 4, single buffered']
    #allocation13 [shape = 's32[1]{0}', space=sflag, size = 0x4, scoped, tag = 'scoped memory for tpu_custom_call.1']
    #allocation14 [shape = 'u8[65536]{0}', space=vmem, size = 0x10000, scoped, tag = 'input window, operand 6, single buffered']
    #allocation15 [shape = 'u8[65536]{0}', space=vmem, size = 0x10000, scoped, tag = 'input window, operand 8, single buffered']
    #allocation16 [shape = 's32[1]{0}', space=sflag, size = 0x4, scoped, tag = 'scoped memory for tpu_custom_call.1']
    #allocation17 [shape = 'u8[8192]{0}', space=vmem, size = 0x2000, scoped, tag = 'output window, operand 0']
    %23 = vsyncpa [#allocation10], 0
    %s24 = scalar_lea.sflag [#allocation10], 1
    %25 = vsyncpa %s24, 0
    %26 = vsyncpa [#allocation13], 0
    %27 = vsyncpa [#allocation16], 0
    %28 = vsyncpa [#allocation11], 0
    %s29 = scalar_lea.sflag [#allocation11], 1
    %30 = vsyncpa %s29, 0
    loop: start=0, step=1, limit=6
    $region2: #{tpu_custom_call.1} parent=1 // loop_pre_header
      _
    $region3: #{tpu_custom_call.1} parent=1 // loop_header
      %s32 = sphi 0, %s36
      %p33 = scmp.ge.s32.totalorder %s32, 6
      %s39 = sphi 0, %s51
      %s40 = sphi 0, %s47
      %s41 = sphi 0, %s39
      %s42 = sphi 0, %s40
      %s43 = sphi 0, %s41
      %s44 = sphi 0, %s42
      %s56 = sphi 0, %s58
      %s59 = sphi 0, %s56
      %s60 = sphi 0, %s59
      %s76 = sphi 0, %s60
      %s80 = sphi 0, %s80
      %s82 = sphi 0, %s80
      %s83 = sphi 0, %s82
      %s97 = sphi 0, %s83
      %s101 = sphi 0, %s101
      %s103 = sphi 0, %s101
      %s104 = sphi 0, %s103
      %s118 = sphi 0, %s104
      %s122 = sphi 0, %s122
      %s124 = sphi 0, %s122
      %s125 = sphi 0, %s124
      %s139 = sphi 0, %s125
      %s143 = sphi 0, %s143
      %s145 = sphi 0, %s143
      %s146 = sphi 0, %s145
      %s160 = sphi 0, %s146
      %s164 = sphi 0, %s164
      %s166 = sphi 0, %s164
      %s167 = sphi 0, %s166
      %s181 = sphi 0, %s167
      %s185 = sphi 0, %s185
      %s187 = sphi 0, %s185
      %s188 = sphi 0, %s187
      %s202 = sphi 0, %s188
      %s208 = sphi 0, %s210
      %s211 = sphi 0, %s208
      %s212 = sphi 0, %s211
      %s228 = sphi 0, %s212
    $region4: #{tpu_custom_call.1} parent=1 // loop_header_branch
      %35 = sbr.rel (%p33) target = $region8
    $region5: #{tpu_custom_call.1} parent=1 // loop_body
      %s37 = ssub.s32 %s32, 1
      %s38 = ssub.s32 %s32, 2
      %s45 = sadd.s32 1, %s40
      %p46 = scmp.ge.s32.totalorder %s45, 2
      %s47 = scalar_select %p46, 0, %s45
      %s48 = sadd.s32 1, %s39
      %s49 = scalar_select %p46, %s48, %s39
      %p50 = scmp.ge.s32.totalorder %s49, 2
      %s51 = scalar_select %p50, 0, %s49
      %s52 = ssub.s32 %s39, %s51
      %s53 = ssub.s32 %s40, %s47
      %s54 = sor.u32 %s52, %s53
      %p55 = scmp.eq.s32.totalorder %s54, 0
      %s57 = sadd.s32 %s56, 1
      %s58 = scalar_select %p55, %s56, %s57
      %p61 = pneg %p55
      %p62 = scmp.eq.s32.totalorder %s32, 3
      %p63 = por %p61, %p62
      %p64 = scmp.ne.s32.totalorder %s56, %s59
      %p65 = scmp.eq.s32.totalorder %s32, 0
      %p66 = por %p64, %p65
      %p67 = scmp.ne.s32.totalorder %s56, %s59
      %p68 = scmp.eq.s32.totalorder %s37, 3
      %p69 = por %p67, %p68
      %p70 = scmp.ne.s32.totalorder %s59, %s60
      %p71 = scmp.eq.s32.totalorder %s37, 0
      %p72 = por %p70, %p71
      %p73 = scmp.ne.s32.totalorder %s59, %s60
      %p74 = scmp.eq.s32.totalorder %s38, 3
      %p75 = por %p73, %p74
      %p77 = scmp.ne.s32.totalorder %s60, %s76
      %p78 = scmp.eq.s32.totalorder %s38, 0
      %p79 = por %p77, %p78
      %s81 = sadd.s32 %s80, 1
      %p84 = scmp.eq.s32.totalorder %s32, 3
      %p85 = scmp.ne.s32.totalorder %s80, %s82
      %p86 = scmp.eq.s32.totalorder %s32, 0
      %p87 = por %p85, %p86
      %p88 = scmp.ne.s32.totalorder %s80, %s82
      %p89 = scmp.eq.s32.totalorder %s37, 3
      %p90 = por %p88, %p89
      %p91 = scmp.ne.s32.totalorder %s82, %s83
      %p92 = scmp.eq.s32.totalorder %s37, 0
      %p93 = por %p91, %p92
      %p94 = scmp.ne.s32.totalorder %s82, %s83
      %p95 = scmp.eq.s32.totalorder %s38, 3
      %p96 = por %p94, %p95
      %p98 = scmp.ne.s32.totalorder %s83, %s97
      %p99 = scmp.eq.s32.totalorder %s38, 0
      %p100 = por %p98, %p99
      %s102 = sadd.s32 %s101, 1
      %p105 = scmp.eq.s32.totalorder %s32, 3
      %p106 = scmp.ne.s32.totalorder %s101, %s103
      %p107 = scmp.eq.s32.totalorder %s32, 0
      %p108 = por %p106, %p107
      %p109 = scmp.ne.s32.totalorder %s101, %s103
      %p110 = scmp.eq.s32.totalorder %s37, 3
      %p111 = por %p109, %p110
      %p112 = scmp.ne.s32.totalorder %s103, %s104
      %p113 = scmp.eq.s32.totalorder %s37, 0
      %p114 = por %p112, %p113
      %p115 = scmp.ne.s32.totalorder %s103, %s104
      %p116 = scmp.eq.s32.totalorder %s38, 3
      %p117 = por %p115, %p116
      %p119 = scmp.ne.s32.totalorder %s104, %s118
      %p120 = scmp.eq.s32.totalorder %s38, 0
      %p121 = por %p119, %p120
      %s123 = sadd.s32 %s122, 1
      %p126 = scmp.eq.s32.totalorder %s32, 3
      %p127 = scmp.ne.s32.totalorder %s122, %s124
      %p128 = scmp.eq.s32.totalorder %s32, 0
      %p129 = por %p127, %p128
      %p130 = scmp.ne.s32.totalorder %s122, %s124
      %p131 = scmp.eq.s32.totalorder %s37, 3
      %p132 = por %p130, %p131
      %p133 = scmp.ne.s32.totalorder %s124, %s125
      %p134 = scmp.eq.s32.totalorder %s37, 0
      %p135 = por %p133, %p134
      %p136 = scmp.ne.s32.totalorder %s124, %s125
      %p137 = scmp.eq.s32.totalorder %s38, 3
      %p138 = por %p136, %p137
      %p140 = scmp.ne.s32.totalorder %s125, %s139
      %p141 = scmp.eq.s32.totalorder %s38, 0
      %p142 = por %p140, %p141
      %s144 = sadd.s32 %s143, 1
      %p147 = scmp.eq.s32.totalorder %s32, 3
      %p148 = scmp.ne.s32.totalorder %s143, %s145
      %p149 = scmp.eq.s32.totalorder %s32, 0
      %p150 = por %p148, %p149
      %p151 = scmp.ne.s32.totalorder %s143, %s145
      %p152 = scmp.eq.s32.totalorder %s37, 3
      %p153 = por %p151, %p152
      %p154 = scmp.ne.s32.totalorder %s145, %s146
      %p155 = scmp.eq.s32.totalorder %s37, 0
      %p156 = por %p154, %p155
      %p157 = scmp.ne.s32.totalorder %s145, %s146
      %p158 = scmp.eq.s32.totalorder %s38, 3
      %p159 = por %p157, %p158
      %p161 = scmp.ne.s32.totalorder %s146, %s160
      %p162 = scmp.eq.s32.totalorder %s38, 0
      %p163 = por %p161, %p162
      %s165 = sadd.s32 %s164, 1
      %p168 = scmp.eq.s32.totalorder %s32, 3
      %p169 = scmp.ne.s32.totalorder %s164, %s166
      %p170 = scmp.eq.s32.totalorder %s32, 0
      %p171 = por %p169, %p170
      %p172 = scmp.ne.s32.totalorder %s164, %s166
      %p173 = scmp.eq.s32.totalorder %s37, 3
      %p174 = por %p172, %p173
      %p175 = scmp.ne.s32.totalorder %s166, %s167
      %p176 = scmp.eq.s32.totalorder %s37, 0
      %p177 = por %p175, %p176
      %p178 = scmp.ne.s32.totalorder %s166, %s167
      %p179 = scmp.eq.s32.totalorder %s38, 3
      %p180 = por %p178, %p179
      %p182 = scmp.ne.s32.totalorder %s167, %s181
      %p183 = scmp.eq.s32.totalorder %s38, 0
      %p184 = por %p182, %p183
      %s186 = sadd.s32 %s185, 1
      %p189 = scmp.eq.s32.totalorder %s32, 3
      %p190 = scmp.ne.s32.totalorder %s185, %s187
      %p191 = scmp.eq.s32.totalorder %s32, 0
      %p192 = por %p190, %p191
      %p193 = scmp.ne.s32.totalorder %s185, %s187
      %p194 = scmp.eq.s32.totalorder %s37, 3
      %p195 = por %p193, %p194
      %p196 = scmp.ne.s32.totalorder %s187, %s188
      %p197 = scmp.eq.s32.totalorder %s37, 0
      %p198 = por %p196, %p197
      %p199 = scmp.ne.s32.totalorder %s187, %s188
      %p200 = scmp.eq.s32.totalorder %s38, 3
      %p201 = por %p199, %p200
      %p203 = scmp.ne.s32.totalorder %s188, %s202
      %p204 = scmp.eq.s32.totalorder %s38, 0
      %p205 = por %p203, %p204
      %s206 = ssub.s32 %s39, %s51
      %p207 = scmp.eq.s32.totalorder %s206, 0
      %s209 = sadd.s32 %s208, 1
      %s210 = scalar_select %p207, %s208, %s209
      %p213 = pneg %p207
      %p214 = scmp.eq.s32.totalorder %s32, 3
      %p215 = por %p213, %p214
      %p216 = scmp.ne.s32.totalorder %s208, %s211
      %p217 = scmp.eq.s32.totalorder %s32, 0
      %p218 = por %p216, %p217
      %p219 = scmp.ne.s32.totalorder %s208, %s211
      %p220 = scmp.eq.s32.totalorder %s37, 3
      %p221 = por %p219, %p220
      %p222 = scmp.ne.s32.totalorder %s211, %s212
      %p223 = scmp.eq.s32.totalorder %s37, 0
      %p224 = por %p222, %p223
      %p225 = scmp.ne.s32.totalorder %s211, %s212
      %p226 = scmp.eq.s32.totalorder %s38, 3
      %p227 = por %p225, %p226
      %p229 = scmp.ne.s32.totalorder %s212, %s228
      %p230 = scmp.eq.s32.totalorder %s38, 0
      %p231 = por %p229, %p230
      %p232 = scmp.le.s32.totalorder 1, %s32
      %p233 = scmp.lt.s32.totalorder %s32, 5
      %p234 = pnand %p232, %p233
      %p235 = pneg %p234
      // Predicated region
      $region9: #{tpu_custom_call.1} parent=5 // pred_check
        _
      $region10: #{tpu_custom_call.1} parent=5 // pred_check_branch
        %237 = sbr.rel (%p234) target = $region12
      $region11: #{tpu_custom_call.1} parent=5 // pred_region
        %s238 = ssub.s32 %s32, 1
        // Predicated region
        $region13: #{tpu_custom_call.1} parent=11 // pred_check
          %p239 = pneg %p93
        $region14: #{tpu_custom_call.1} parent=11 // pred_check_branch
          %241 = sbr.rel (%p239) target = $region16
        $region15: #{tpu_custom_call.1} parent=11 // pred_region
          %s243 = ssub.s32 2048, 2048
          %244 = vsyncadd [#allocation13], %s243
          %s245 = sshll.u32 [#allocation12], 4
          %s246 = int_to_ptr.vmem [resolvable:$true] %s245
          %251 = dma.hbm_to_vmem [thread:$0]  %s4, 2048, %s246, [#allocation13], 128, 128, 8
        $region16: #{tpu_custom_call.1} parent=11 // pred_fallthru
          _
        // Predicated region
        $region17: #{tpu_custom_call.1} parent=11 // pred_check
          %p252 = pneg %p114
        $region18: #{tpu_custom_call.1} parent=11 // pred_check_branch
          %254 = sbr.rel (%p252) target = $region20
        $region19: #{tpu_custom_call.1} parent=11 // pred_region
          _
        $region20: #{tpu_custom_call.1} parent=11 // pred_fallthru
          _
        // Predicated region
        $region21: #{tpu_custom_call.1} parent=11 // pred_check
          %p255 = pneg %p135
        $region22: #{tpu_custom_call.1} parent=11 // pred_check_branch
          %257 = sbr.rel (%p255) target = $region24
        $region23: #{tpu_custom_call.1} parent=11 // pred_region
          %s259 = ssub.s32 2048, 2048
          %260 = vsyncadd [#allocation13], %s259
          %s261 = sshll.u32 [#allocation14], 4
          %s262 = int_to_ptr.vmem [resolvable:$true] %s261
          %267 = dma.hbm_to_vmem [thread:$0]  %s6, 2048, %s262, [#allocation13], 128, 128, 8
        $region24: #{tpu_custom_call.1} parent=11 // pred_fallthru
          _
        // Predicated region
        $region25: #{tpu_custom_call.1} parent=11 // pred_check
          %p268 = pneg %p156
        $region26: #{tpu_custom_call.1} parent=11 // pred_check_branch
          %270 = sbr.rel (%p268) target = $region28
        $region27: #{tpu_custom_call.1} parent=11 // pred_region
          _
        $region28: #{tpu_custom_call.1} parent=11 // pred_fallthru
          _
        // Predicated region
        $region29: #{tpu_custom_call.1} parent=11 // pred_check
          %p271 = pneg %p177
        $region30: #{tpu_custom_call.1} parent=11 // pred_check_branch
          %273 = sbr.rel (%p271) target = $region32
        $region31: #{tpu_custom_call.1} parent=11 // pred_region
          %s275 = ssub.s32 2048, 2048
          %276 = vsyncadd [#allocation16], %s275
          %s277 = sshll.u32 [#allocation15], 4
          %s278 = int_to_ptr.vmem [resolvable:$true] %s277
          %283 = dma.hbm_to_vmem [thread:$0]  %s8, 2048, %s278, [#allocation16], 128, 128, 8
        $region32: #{tpu_custom_call.1} parent=11 // pred_fallthru
          _
        // Predicated region
        $region33: #{tpu_custom_call.1} parent=11 // pred_check
          %p284 = pneg %p198
        $region34: #{tpu_custom_call.1} parent=11 // pred_check_branch
          %286 = sbr.rel (%p284) target = $region36
        $region35: #{tpu_custom_call.1} parent=11 // pred_region
          _
        $region36: #{tpu_custom_call.1} parent=11 // pred_fallthru
          _
      $region12: #{tpu_custom_call.1} parent=5 // pred_fallthru
        _
      %p287 = scmp.lt.s32.totalorder %s32, 4
      // Predicated region
      $region37: #{tpu_custom_call.1} parent=5 // pred_check
        %p288 = pneg %p287
      $region38: #{tpu_custom_call.1} parent=5 // pred_check_branch
        %290 = sbr.rel (%p288) target = $region40
      $region39: #{tpu_custom_call.1} parent=5 // pred_region
        // Predicated region
        $region41: #{tpu_custom_call.1} parent=39 // pred_check
          %p291 = pneg %p66
        $region42: #{tpu_custom_call.1} parent=39 // pred_check_branch
          %293 = sbr.rel (%p291) target = $region44
        $region43: #{tpu_custom_call.1} parent=39 // pred_region
          %s294 = sand.u32 %s56, 1
          %s295 = scalar_lea.sflag [#allocation10], %s294
          %s296 = sand.u32 %s56, 1
          %s297 = smul.addr %s296, 8
          %s298 = scalar_lea.vmem [#allocation9], %s297
          %s300 = ssub.s32 128, 128
          %301 = vsyncadd %s295, %s300
          %s302 = smul.addr %s39, 2
          %s303 = sadd.s32 %s40, %s302
          %s304 = smul.addr %s303, 128
          %s305 = scalar_lea.hbm %s2, %s304
          %s307 = sshll.u32 %s298, 4
          %s308 = int_to_ptr.vmem [resolvable:$true] %s307
          %310 = dma.hbm_to_vmem [thread:$0]  %s305, 128, %s308, %s295
        $region44: #{tpu_custom_call.1} parent=39 // pred_fallthru
          _
      $region40: #{tpu_custom_call.1} parent=5 // pred_fallthru
        _
      %p311 = scmp.le.s32.totalorder 1, %s32
      %p312 = scmp.lt.s32.totalorder %s32, 5
      %p313 = pnand %p311, %p312
      %p314 = pneg %p313
      // Predicated region
      $region45: #{tpu_custom_call.1} parent=5 // pred_check
        _
      $region46: #{tpu_custom_call.1} parent=5 // pred_check_branch
        %316 = sbr.rel (%p313) target = $region48
      $region47: #{tpu_custom_call.1} parent=5 // pred_region
        %s317 = ssub.s32 %s32, 1
        %s318 = sand.u32 %s59, 1
        %s319 = scalar_lea.sflag [#allocation10], %s318
        %s320 = sand.u32 %s59, 1
        %s321 = smul.addr %s320, 8
        %s322 = scalar_lea.vmem [#allocation9], %s321
        // Predicated region
        $region49: #{tpu_custom_call.1} parent=47 // pred_check
          %p323 = pneg %p72
        $region50: #{tpu_custom_call.1} parent=47 // pred_check_branch
          %325 = sbr.rel (%p323) target = $region52
        $region51: #{tpu_custom_call.1} parent=47 // pred_region
          %326 = dma.done %s319, 128
        $region52: #{tpu_custom_call.1} parent=47 // pred_fallthru
          _
        // Predicated region
        $region53: #{tpu_custom_call.1} parent=47 // pred_check
          %p327 = pneg %p93
        $region54: #{tpu_custom_call.1} parent=47 // pred_check_branch
          %329 = sbr.rel (%p327) target = $region56
        $region55: #{tpu_custom_call.1} parent=47 // pred_region
          %330 = dma.done [#allocation13], 2048
        $region56: #{tpu_custom_call.1} parent=47 // pred_fallthru
          _
        // Predicated region
        $region57: #{tpu_custom_call.1} parent=47 // pred_check
          %p331 = pneg %p135
        $region58: #{tpu_custom_call.1} parent=47 // pred_check_branch
          %333 = sbr.rel (%p331) target = $region60
        $region59: #{tpu_custom_call.1} parent=47 // pred_region
          %334 = dma.done [#allocation13], 2048
        $region60: #{tpu_custom_call.1} parent=47 // pred_fallthru
          _
        // Predicated region
        $region61: #{tpu_custom_call.1} parent=47 // pred_check
          %p335 = pneg %p177
        $region62: #{tpu_custom_call.1} parent=47 // pred_check_branch
          %337 = sbr.rel (%p335) target = $region64
        $region63: #{tpu_custom_call.1} parent=47 // pred_region
          %338 = dma.done [#allocation16], 2048
        $region64: #{tpu_custom_call.1} parent=47 // pred_fallthru
          _
        %s339 = sand.u32 %s59, 1
        %s340 = scalar_lea.sflag [#allocation10], %s339
        %s341 = sand.u32 %s59, 1
        %s342 = smul.addr %s341, 8
        %s343 = scalar_lea.vmem [#allocation9], %s342
        %p344 = pneg %p72
        %p345 = pneg %p69
        %p346 = pneg %p93
        %p347 = pneg %p90
        %p348 = pneg %p114
        %p349 = pneg %p111
        %p350 = pneg %p135
        %p351 = pneg %p132
        %p352 = pneg %p156
        %p353 = pneg %p153
        %p354 = pneg %p177
        %p355 = pneg %p174
        %p356 = pneg %p198
        %p357 = pneg %p195
        %p358 = pneg %p224
        %p359 = pneg %p221
        %s360 = sand.u32 %s211, 1
        %s361 = scalar_lea.sflag [#allocation11], %s360
        %s362 = sand.u32 %s211, 1
        %s363 = smul.addr %s362, 8
        %s364 = scalar_lea.vmem [#allocation17], %s363
        %s365 = smul.u32 %s41, 8
        %s366 = sld [smem:[#allocation8 + %s41]]
        %p367 = scmp.eq.s32.totalorder %s42, 0
        // Predicated region
        $region65: #{tpu_custom_call.1} parent=47 // pred_check
          %p368 = pneg %p367
        $region66: #{tpu_custom_call.1} parent=47 // pred_check_branch
          %370 = sbr.rel (%p368) target = $region68
        $region67: #{tpu_custom_call.1} parent=47 // pred_region
          %371 = vst [vmem:[#allocation3] sm:$0xff] 0.0
          %vm372 = vcmask 7168
          %373 = vst.msk [vmem:[#allocation4] sm:$0xff] %vm372, 0.0
          %p374 = scmp.gt.s32.totalorder %s366, 0
          // Predicated region
          $region69: #{tpu_custom_call.1} parent=67 // pred_check
            %p375 = pneg %p374
          $region70: #{tpu_custom_call.1} parent=67 // pred_check_branch
            %377 = sbr.rel (%p375) target = $region72
          $region71: #{tpu_custom_call.1} parent=67 // pred_region
            loop: start=0, step=1, limit=8
            $region73: #{tpu_custom_call.1} parent=71 // loop_pre_header
              _
            $region74: #{tpu_custom_call.1} parent=71 // loop_header
              %s379 = sphi 0, %s383
              %p380 = scmp.ge.s32.totalorder %s379, 8
            $region75: #{tpu_custom_call.1} parent=71 // loop_header_branch
              %382 = sbr.rel (%p380) target = $region79
            $region76: #{tpu_custom_call.1} parent=71 // loop_body
              %s384 = sadd.s32 %s365, %s379
              %s385 = smul.u32 %s379, 128
              loop: start=0, step=1, limit=128
              $region80: #{tpu_custom_call.1} parent=76 // loop_pre_header
                _
              $region81: #{tpu_custom_call.1} parent=76 // loop_header
                %s387 = sphi 0, %s391
                %p388 = scmp.ge.s32.totalorder %s387, 128
              $region82: #{tpu_custom_call.1} parent=76 // loop_header_branch
                %390 = sbr.rel (%p388) target = $region86
              $region83: #{tpu_custom_call.1} parent=76 // loop_body
                %s392 = sshra.s32 %s387, 7
                %s393 = sand.u32 %s387, 127
                %s394 = sshra.s32 %s384, 3
                %s395 = sand.u32 %s384, 7
                %s396 = smul.u32 %s394, 2
                %s397 = sadd.s32 %s392, %s396
                %s398 = smul.u32 %s397, 1024
                %s399 = sshra.s32 %s384, 3
                %s400 = sand.u32 %s384, 7
                %s401 = sshra.s32 %s387, 7
                %s402 = sand.u32 %s387, 127
                %s403 = smul.u32 %s400, 128
                %s404 = sadd.s32 %s403, %s402
                %s405 = sadd.s32 %s398, %s404
                %s406 = sld [smem:[#allocation7 + %s405]]
                %s407 = sadd.s32 %s385, %s387
                %s408 = smul.addr %s406, 16
                %s409 = scalar_lea.hbm %s3, %s408
                %s410 = scalar_lea.vmem [#allocation2], %s407
                // Predicated region
                $region87: #{tpu_custom_call.1} parent=83 // pred_check
                  _
                $region88: #{tpu_custom_call.1} parent=83 // pred_check_branch
                  %412 = sbr.rel target = $region90
                $region89: #{tpu_custom_call.1} parent=83 // pred_region
                  %413 = sst [smem:[#allocation20]] [#allocation19]
                  %414 = sst [smem:[#allocation21]] [#allocation18]
                $region90: #{tpu_custom_call.1} parent=83 // pred_fallthru
                  _
                %416 = shalt.err (0)
                %s418 = sshll.u32 %s410, 4
                %s419 = int_to_ptr.vmem [resolvable:$true] %s418
                %421 = dma.hbm_to_vmem [thread:$0]  %s409, 16, %s419, [#allocation5]
              $region84: #{tpu_custom_call.1} parent=76 // loop_footer
                %s391 = sadd.s32 1, %s387
              $region85: #{tpu_custom_call.1} parent=76 // loop_footer_branch
                %386 = sbr.rel target = $region81
              $region86: #{tpu_custom_call.1} parent=76 // loop_exit
                _
            $region77: #{tpu_custom_call.1} parent=71 // loop_footer
              %s383 = sadd.s32 1, %s379
            $region78: #{tpu_custom_call.1} parent=71 // loop_footer_branch
              %378 = sbr.rel target = $region74
            $region79: #{tpu_custom_call.1} parent=71 // loop_exit
              _
          $region72: #{tpu_custom_call.1} parent=67 // pred_fallthru
            _
        $region68: #{tpu_custom_call.1} parent=47 // pred_fallthru
          _
        %p422 = scmp.lt.s32.totalorder %s42, 0
        %s423 = ssub.s32 0, %s42
        %s424 = scalar_select %p422, %s423, %s42
        %s425 = sand.u32 %s424, 1
        %s426 = ssub.s32 0, %s425
        %s427 = scalar_select %p422, %s426, %s425
        %p428 = scmp.ne.s32.totalorder %s427, 0
        %p429 = scmp.lt.s32.totalorder %s427, 0
        %p430 = pnand %p429, %p428
        %p431 = pneg %p430
        %s432 = sadd.s32 %s427, 2
        %s433 = scalar_select %p431, %s432, %s427
        %s434 = sadd.s32 %s42, 1
        %p435 = scmp.lt.s32.totalorder %s434, 2
        %s436 = smul.u32 %s434, 128
        %p437 = scmp.lt.s32.totalorder %s436, %s366
        %p438 = pnand %p435, %p437
        %p439 = pneg %p438
        // Predicated region
        $region91: #{tpu_custom_call.1} parent=47 // pred_check
          _
        $region92: #{tpu_custom_call.1} parent=47 // pred_check_branch
          %441 = sbr.rel (%p438) target = $region94
        $region93: #{tpu_custom_call.1} parent=47 // pred_region
          %s442 = ssub.s32 1, %s433
          loop: start=0, step=1, limit=8
          $region95: #{tpu_custom_call.1} parent=93 // loop_pre_header
            _
          $region96: #{tpu_custom_call.1} parent=93 // loop_header
            %s444 = sphi 0, %s448
            %p445 = scmp.ge.s32.totalorder %s444, 8
          $region97: #{tpu_custom_call.1} parent=93 // loop_header_branch
            %447 = sbr.rel (%p445) target = $region101
          $region98: #{tpu_custom_call.1} parent=93 // loop_body
            %s449 = sadd.s32 %s365, %s444
            %s450 = smul.u32 %s444, 128
            loop: start=0, step=1, limit=128
            $region102: #{tpu_custom_call.1} parent=98 // loop_pre_header
              _
            $region103: #{tpu_custom_call.1} parent=98 // loop_header
              %s452 = sphi 0, %s456
              %p453 = scmp.ge.s32.totalorder %s452, 128
            $region104: #{tpu_custom_call.1} parent=98 // loop_header_branch
              %455 = sbr.rel (%p453) target = $region108
            $region105: #{tpu_custom_call.1} parent=98 // loop_body
              %s457 = sadd.s32 %s436, %s452
              %s458 = sshra.s32 %s457, 7
              %s459 = sand.u32 %s457, 127
              %s460 = sshra.s32 %s449, 3
              %s461 = sand.u32 %s449, 7
              %s462 = smul.u32 %s460, 2
              %s463 = sadd.s32 %s458, %s462
              %s464 = smul.u32 %s463, 1024
              %s465 = sshra.s32 %s449, 3
              %s466 = sand.u32 %s449, 7
              %s467 = sshra.s32 %s457, 7
              %s468 = sand.u32 %s457, 127
              %s469 = smul.u32 %s466, 128
              %s470 = sadd.s32 %s469, %s468
              %s471 = sadd.s32 %s464, %s470
              %s472 = sld [smem:[#allocation7 + %s471]]
              %s473 = sadd.s32 %s450, %s452
              %s474 = smul.addr %s472, 16
              %s475 = scalar_lea.hbm %s3, %s474
              %s476 = smul.u32 %s442, 1024
              %s477 = sadd.s32 %s473, %s476
              %s478 = scalar_lea.vmem [#allocation2], %s477
              %s479 = scalar_lea.sflag [#allocation5], %s442
              // Predicated region
              $region109: #{tpu_custom_call.1} parent=105 // pred_check
                _
              $region110: #{tpu_custom_call.1} parent=105 // pred_check_branch
                %481 = sbr.rel target = $region112
              $region111: #{tpu_custom_call.1} parent=105 // pred_region
                %482 = sst [smem:[#allocation20]] [#allocation23]
                %483 = sst [smem:[#allocation21]] [#allocation22]
              $region112: #{tpu_custom_call.1} parent=105 // pred_fallthru
                _
              %485 = shalt.err (0)
              %s487 = sshll.u32 %s478, 4
              %s488 = int_to_ptr.vmem [resolvable:$true] %s487
              %490 = dma.hbm_to_vmem [thread:$0]  %s475, 16, %s488, %s479
            $region106: #{tpu_custom_call.1} parent=98 // loop_footer
              %s456 = sadd.s32 1, %s452
            $region107: #{tpu_custom_call.1} parent=98 // loop_footer_branch
              %451 = sbr.rel target = $region103
            $region108: #{tpu_custom_call.1} parent=98 // loop_exit
              _
          $region99: #{tpu_custom_call.1} parent=93 // loop_footer
            %s448 = sadd.s32 1, %s444
          $region100: #{tpu_custom_call.1} parent=93 // loop_footer_branch
            %443 = sbr.rel target = $region96
          $region101: #{tpu_custom_call.1} parent=93 // loop_exit
            _
        $region94: #{tpu_custom_call.1} parent=47 // pred_fallthru
          _
        %s491 = smul.u32 %s42, 128
        %p492 = scmp.lt.s32.totalorder %s491, %s366
        // Predicated region
        $region113: #{tpu_custom_call.1} parent=47 // pred_check
          %p493 = pneg %p492
        $region114: #{tpu_custom_call.1} parent=47 // pred_check_branch
          %495 = sbr.rel (%p493) target = $region116
        $region115: #{tpu_custom_call.1} parent=47 // pred_region
          loop: start=0, step=1, limit=1024
          $region117: #{tpu_custom_call.1} parent=115 // loop_pre_header
            _
          $region118: #{tpu_custom_call.1} parent=115 // loop_header
            %s497 = sphi 0, %s501
            %p498 = scmp.ge.s32.totalorder %s497, 1024
          $region119: #{tpu_custom_call.1} parent=115 // loop_header_branch
            %500 = sbr.rel (%p498) target = $region123
          $region120: #{tpu_custom_call.1} parent=115 // loop_body
            %s502 = scalar_lea.sflag [#allocation5], %s433
            %504 = dma.done %s502, 16
          $region121: #{tpu_custom_call.1} parent=115 // loop_footer
            %s501 = sadd.s32 1, %s497
          $region122: #{tpu_custom_call.1} parent=115 // loop_footer_branch
            %496 = sbr.rel target = $region118
          $region123: #{tpu_custom_call.1} parent=115 // loop_exit
            _
          %v505 = vld [vmem:[%s322] sm:$0xff]
          %s506 = smul.u32 %s433, 1024
          %s507 = scalar_lea.vmem [#allocation2], %s506
          %v508 = vld [vmem:[%s507] sm:$0xff]
          %v509 = vld [vmem:[%s507 + $0x8] sm:$0xff]
          %v510 = vld [vmem:[%s507 + $0x10] sm:$0xff]
          %v511 = vld [vmem:[%s507 + $0x18] sm:$0xff]
          %v512 = vld [vmem:[%s507 + $0x20] sm:$0xff]
          %v513 = vld [vmem:[%s507 + $0x28] sm:$0xff]
          %v514 = vld [vmem:[%s507 + $0x30] sm:$0xff]
          %v515 = vld [vmem:[%s507 + $0x38] sm:$0xff]
          %v516 = vld [vmem:[%s507 + $0x40] sm:$0xff]
          %v517 = vld [vmem:[%s507 + $0x48] sm:$0xff]
          %v518 = vld [vmem:[%s507 + $0x50] sm:$0xff]
          %v519 = vld [vmem:[%s507 + $0x58] sm:$0xff]
          %v520 = vld [vmem:[%s507 + $0x60] sm:$0xff]
          %v521 = vld [vmem:[%s507 + $0x68] sm:$0xff]
          %v522 = vld [vmem:[%s507 + $0x70] sm:$0xff]
          %v523 = vld [vmem:[%s507 + $0x78] sm:$0xff]
          %v524 = vld [vmem:[%s507 + $0x80] sm:$0xff]
          %v525 = vld [vmem:[%s507 + $0x88] sm:$0xff]
          %v526 = vld [vmem:[%s507 + $0x90] sm:$0xff]
          %v527 = vld [vmem:[%s507 + $0x98] sm:$0xff]
          %v528 = vld [vmem:[%s507 + $0xa0] sm:$0xff]
          %v529 = vld [vmem:[%s507 + $0xa8] sm:$0xff]
          %v530 = vld [vmem:[%s507 + $0xb0] sm:$0xff]
          %v531 = vld [vmem:[%s507 + $0xb8] sm:$0xff]
          %v532 = vld [vmem:[%s507 + $0xc0] sm:$0xff]
          %v533 = vld [vmem:[%s507 + $0xc8] sm:$0xff]
          %v534 = vld [vmem:[%s507 + $0xd0] sm:$0xff]
          %v535 = vld [vmem:[%s507 + $0xd8] sm:$0xff]
          %v536 = vld [vmem:[%s507 + $0xe0] sm:$0xff]
          %v537 = vld [vmem:[%s507 + $0xe8] sm:$0xff]
          %v538 = vld [vmem:[%s507 + $0xf0] sm:$0xff]
          %v539 = vld [vmem:[%s507 + $0xf8] sm:$0xff]
          %v540 = vld [vmem:[%s507 + $0x100] sm:$0xff]
          %v541 = vld [vmem:[%s507 + $0x108] sm:$0xff]
          %v542 = vld [vmem:[%s507 + $0x110] sm:$0xff]
          %v543 = vld [vmem:[%s507 + $0x118] sm:$0xff]
          %v544 = vld [vmem:[%s507 + $0x120] sm:$0xff]
          %v545 = vld [vmem:[%s507 + $0x128] sm:$0xff]
          %v546 = vld [vmem:[%s507 + $0x130] sm:$0xff]
          %v547 = vld [vmem:[%s507 + $0x138] sm:$0xff]
          %v548 = vld [vmem:[%s507 + $0x140] sm:$0xff]
          %v549 = vld [vmem:[%s507 + $0x148] sm:$0xff]
          %v550 = vld [vmem:[%s507 + $0x150] sm:$0xff]
          %v551 = vld [vmem:[%s507 + $0x158] sm:$0xff]
          %v552 = vld [vmem:[%s507 + $0x160] sm:$0xff]
          %v553 = vld [vmem:[%s507 + $0x168] sm:$0xff]
          %v554 = vld [vmem:[%s507 + $0x170] sm:$0xff]
          %v555 = vld [vmem:[%s507 + $0x178] sm:$0xff]
          %v556 = vld [vmem:[%s507 + $0x180] sm:$0xff]
          %v557 = vld [vmem:[%s507 + $0x188] sm:$0xff]
          %v558 = vld [vmem:[%s507 + $0x190] sm:$0xff]
          %v559 = vld [vmem:[%s507 + $0x198] sm:$0xff]
          %v560 = vld [vmem:[%s507 + $0x1a0] sm:$0xff]
          %v561 = vld [vmem:[%s507 + $0x1a8] sm:$0xff]
          %v562 = vld [vmem:[%s507 + $0x1b0] sm:$0xff]
          %v563 = vld [vmem:[%s507 + $0x1b8] sm:$0xff]
          %v564 = vld [vmem:[%s507 + $0x1c0] sm:$0xff]
          %v565 = vld [vmem:[%s507 + $0x1c8] sm:$0xff]
          %v566 = vld [vmem:[%s507 + $0x1d0] sm:$0xff]
          %v567 = vld [vmem:[%s507 + $0x1d8] sm:$0xff]
          %v568 = vld [vmem:[%s507 + $0x1e0] sm:$0xff]
          %v569 = vld [vmem:[%s507 + $0x1e8] sm:$0xff]
          %v570 = vld [vmem:[%s507 + $0x1f0] sm:$0xff]
          %v571 = vld [vmem:[%s507 + $0x1f8] sm:$0xff]
          %v572 = vld [vmem:[%s507 + $0x200] sm:$0xff]
          %v573 = vld [vmem:[%s507 + $0x208] sm:$0xff]
          %v574 = vld [vmem:[%s507 + $0x210] sm:$0xff]
          %v575 = vld [vmem:[%s507 + $0x218] sm:$0xff]
          %v576 = vld [vmem:[%s507 + $0x220] sm:$0xff]
          %v577 = vld [vmem:[%s507 + $0x228] sm:$0xff]
          %v578 = vld [vmem:[%s507 + $0x230] sm:$0xff]
          %v579 = vld [vmem:[%s507 + $0x238] sm:$0xff]
          %v580 = vld [vmem:[%s507 + $0x240] sm:$0xff]
          %v581 = vld [vmem:[%s507 + $0x248] sm:$0xff]
          %v582 = vld [vmem:[%s507 + $0x250] sm:$0xff]
          %v583 = vld [vmem:[%s507 + $0x258] sm:$0xff]
          %v584 = vld [vmem:[%s507 + $0x260] sm:$0xff]
          %v585 = vld [vmem:[%s507 + $0x268] sm:$0xff]
          %v586 = vld [vmem:[%s507 + $0x270] sm:$0xff]
          %v587 = vld [vmem:[%s507 + $0x278] sm:$0xff]
          %v588 = vld [vmem:[%s507 + $0x280] sm:$0xff]
          %v589 = vld [vmem:[%s507 + $0x288] sm:$0xff]
          %v590 = vld [vmem:[%s507 + $0x290] sm:$0xff]
          %v591 = vld [vmem:[%s507 + $0x298] sm:$0xff]
          %v592 = vld [vmem:[%s507 + $0x2a0] sm:$0xff]
          %v593 = vld [vmem:[%s507 + $0x2a8] sm:$0xff]
          %v594 = vld [vmem:[%s507 + $0x2b0] sm:$0xff]
          %v595 = vld [vmem:[%s507 + $0x2b8] sm:$0xff]
          %v596 = vld [vmem:[%s507 + $0x2c0] sm:$0xff]
          %v597 = vld [vmem:[%s507 + $0x2c8] sm:$0xff]
          %v598 = vld [vmem:[%s507 + $0x2d0] sm:$0xff]
          %v599 = vld [vmem:[%s507 + $0x2d8] sm:$0xff]
          %v600 = vld [vmem:[%s507 + $0x2e0] sm:$0xff]
          %v601 = vld [vmem:[%s507 + $0x2e8] sm:$0xff]
          %v602 = vld [vmem:[%s507 + $0x2f0] sm:$0xff]
          %v603 = vld [vmem:[%s507 + $0x2f8] sm:$0xff]
          %v604 = vld [vmem:[%s507 + $0x300] sm:$0xff]
          %v605 = vld [vmem:[%s507 + $0x308] sm:$0xff]
          %v606 = vld [vmem:[%s507 + $0x310] sm:$0xff]
          %v607 = vld [vmem:[%s507 + $0x318] sm:$0xff]
          %v608 = vld [vmem:[%s507 + $0x320] sm:$0xff]
          %v609 = vld [vmem:[%s507 + $0x328] sm:$0xff]
          %v610 = vld [vmem:[%s507 + $0x330] sm:$0xff]
          %v611 = vld [vmem:[%s507 + $0x338] sm:$0xff]
          %v612 = vld [vmem:[%s507 + $0x340] sm:$0xff]
          %v613 = vld [vmem:[%s507 + $0x348] sm:$0xff]
          %v614 = vld [vmem:[%s507 + $0x350] sm:$0xff]
          %v615 = vld [vmem:[%s507 + $0x358] sm:$0xff]
          %v616 = vld [vmem:[%s507 + $0x360] sm:$0xff]
          %v617 = vld [vmem:[%s507 + $0x368] sm:$0xff]
          %v618 = vld [vmem:[%s507 + $0x370] sm:$0xff]
          %v619 = vld [vmem:[%s507 + $0x378] sm:$0xff]
          %v620 = vld [vmem:[%s507 + $0x380] sm:$0xff]
          %v621 = vld [vmem:[%s507 + $0x388] sm:$0xff]
          %v622 = vld [vmem:[%s507 + $0x390] sm:$0xff]
          %v623 = vld [vmem:[%s507 + $0x398] sm:$0xff]
          %v624 = vld [vmem:[%s507 + $0x3a0] sm:$0xff]
          %v625 = vld [vmem:[%s507 + $0x3a8] sm:$0xff]
          %v626 = vld [vmem:[%s507 + $0x3b0] sm:$0xff]
          %v627 = vld [vmem:[%s507 + $0x3b8] sm:$0xff]
          %v628 = vld [vmem:[%s507 + $0x3c0] sm:$0xff]
          %v629 = vld [vmem:[%s507 + $0x3c8] sm:$0xff]
          %v630 = vld [vmem:[%s507 + $0x3d0] sm:$0xff]
          %v631 = vld [vmem:[%s507 + $0x3d8] sm:$0xff]
          %v632 = vld [vmem:[%s507 + $0x3e0] sm:$0xff]
          %v633 = vld [vmem:[%s507 + $0x3e8] sm:$0xff]
          %v634 = vld [vmem:[%s507 + $0x3f0] sm:$0xff]
          %v635 = vld [vmem:[%s507 + $0x3f8] sm:$0xff]
          %v636 = vld [vmem:[#allocation3] sm:$0xff]
          %v637 = vlaneseq
          %v638 = vshrl.u32 %v637, 7
          %v639 = vsub.s32 0, %v638
          %v640 = vrot.slane %v505, %v639
          %642 = vbcast.lane.b32.xlu0 %v640, 256
          %v643 = vpop.permute.xlu0 %642
          %s645 = sor.u32 256, 8
          %646 = vbcast.lane.b32.xlu0 %v640, %s645
          %v647 = vpop.permute.xlu0 %646
          %s649 = sor.u32 256, 16
          %650 = vbcast.lane.b32.xlu0 %v640, %s649
          %v651 = vpop.permute.xlu0 %650
          %s653 = sor.u32 256, 24
          %654 = vbcast.lane.b32.xlu0 %v640, %s653
          %v655 = vpop.permute.xlu0 %654
          %s657 = sor.u32 256, 32
          %658 = vbcast.lane.b32.xlu0 %v640, %s657
          %v659 = vpop.permute.xlu0 %658
          %s661 = sor.u32 256, 40
          %662 = vbcast.lane.b32.xlu0 %v640, %s661
          %v663 = vpop.permute.xlu0 %662
          %s665 = sor.u32 256, 48
          %666 = vbcast.lane.b32.xlu0 %v640, %s665
          %v667 = vpop.permute.xlu0 %666
          %s669 = sor.u32 256, 56
          %670 = vbcast.lane.b32.xlu0 %v640, %s669
          %v671 = vpop.permute.xlu0 %670
          %s673 = sor.u32 256, 64
          %674 = vbcast.lane.b32.xlu0 %v640, %s673
          %v675 = vpop.permute.xlu0 %674
          %s677 = sor.u32 256, 72
          %678 = vbcast.lane.b32.xlu0 %v640, %s677
          %v679 = vpop.permute.xlu0 %678
          %s681 = sor.u32 256, 80
          %682 = vbcast.lane.b32.xlu0 %v640, %s681
          %v683 = vpop.permute.xlu0 %682
          %s685 = sor.u32 256, 88
          %686 = vbcast.lane.b32.xlu0 %v640, %s685
          %v687 = vpop.permute.xlu0 %686
          %s689 = sor.u32 256, 96
          %690 = vbcast.lane.b32.xlu0 %v640, %s689
          %v691 = vpop.permute.xlu0 %690
          %s693 = sor.u32 256, 104
          %694 = vbcast.lane.b32.xlu0 %v640, %s693
          %v695 = vpop.permute.xlu0 %694
          %s697 = sor.u32 256, 112
          %698 = vbcast.lane.b32.xlu0 %v640, %s697
          %v699 = vpop.permute.xlu0 %698
          %s701 = sor.u32 256, 120
          %702 = vbcast.lane.b32.xlu0 %v640, %s701
          %v703 = vpop.permute.xlu0 %702
          %v704 = vlaneseq
          %v705 = vshrl.u32 %v704, 7
          %v706 = vsub.s32 1, %v705
          %v707 = vrot.slane %v505, %v706
          %709 = vbcast.lane.b32.xlu0 %v707, 256
          %v710 = vpop.permute.xlu0 %709
          %s712 = sor.u32 256, 8
          %713 = vbcast.lane.b32.xlu0 %v707, %s712
          %v714 = vpop.permute.xlu0 %713
          %s716 = sor.u32 256, 16
          %717 = vbcast.lane.b32.xlu0 %v707, %s716
          %v718 = vpop.permute.xlu0 %717
          %s720 = sor.u32 256, 24
          %721 = vbcast.lane.b32.xlu0 %v707, %s720
          %v722 = vpop.permute.xlu0 %721
          %s724 = sor.u32 256, 32
          %725 = vbcast.lane.b32.xlu0 %v707, %s724
          %v726 = vpop.permute.xlu0 %725
          %s728 = sor.u32 256, 40
          %729 = vbcast.lane.b32.xlu0 %v707, %s728
          %v730 = vpop.permute.xlu0 %729
          %s732 = sor.u32 256, 48
          %733 = vbcast.lane.b32.xlu0 %v707, %s732
          %v734 = vpop.permute.xlu0 %733
          %s736 = sor.u32 256, 56
          %737 = vbcast.lane.b32.xlu0 %v707, %s736
          %v738 = vpop.permute.xlu0 %737
          %s740 = sor.u32 256, 64
          %741 = vbcast.lane.b32.xlu0 %v707, %s740
          %v742 = vpop.permute.xlu0 %741
          %s744 = sor.u32 256, 72
          %745 = vbcast.lane.b32.xlu0 %v707, %s744
          %v746 = vpop.permute.xlu0 %745
          %s748 = sor.u32 256, 80
          %749 = vbcast.lane.b32.xlu0 %v707, %s748
          %v750 = vpop.permute.xlu0 %749
          %s752 = sor.u32 256, 88
          %753 = vbcast.lane.b32.xlu0 %v707, %s752
          %v754 = vpop.permute.xlu0 %753
          %s756 = sor.u32 256, 96
          %757 = vbcast.lane.b32.xlu0 %v707, %s756
          %v758 = vpop.permute.xlu0 %757
          %s760 = sor.u32 256, 104
          %761 = vbcast.lane.b32.xlu0 %v707, %s760
          %v762 = vpop.permute.xlu0 %761
          %s764 = sor.u32 256, 112
          %765 = vbcast.lane.b32.xlu0 %v707, %s764
          %v766 = vpop.permute.xlu0 %765
          %s768 = sor.u32 256, 120
          %769 = vbcast.lane.b32.xlu0 %v707, %s768
          %v770 = vpop.permute.xlu0 %769
          %v771 = vlaneseq
          %v772 = vshrl.u32 %v771, 7
          %v773 = vsub.s32 2, %v772
          %v774 = vrot.slane %v505, %v773
          %776 = vbcast.lane.b32.xlu0 %v774, 256
          %v777 = vpop.permute.xlu0 %776
          %s779 = sor.u32 256, 8
          %780 = vbcast.lane.b32.xlu0 %v774, %s779
          %v781 = vpop.permute.xlu0 %780
          %s783 = sor.u32 256, 16
          %784 = vbcast.lane.b32.xlu0 %v774, %s783
          %v785 = vpop.permute.xlu0 %784
          %s787 = sor.u32 256, 24
          %788 = vbcast.lane.b32.xlu0 %v774, %s787
          %v789 = vpop.permute.xlu0 %788
          %s791 = sor.u32 256, 32
          %792 = vbcast.lane.b32.xlu0 %v774, %s791
          %v793 = vpop.permute.xlu0 %792
          %s795 = sor.u32 256, 40
          %796 = vbcast.lane.b32.xlu0 %v774, %s795
          %v797 = vpop.permute.xlu0 %796
          %s799 = sor.u32 256, 48
          %800 = vbcast.lane.b32.xlu0 %v774, %s799
          %v801 = vpop.permute.xlu0 %800
          %s803 = sor.u32 256, 56
          %804 = vbcast.lane.b32.xlu0 %v774, %s803
          %v805 = vpop.permute.xlu0 %804
          %s807 = sor.u32 256, 64
          %808 = vbcast.lane.b32.xlu0 %v774, %s807
          %v809 = vpop.permute.xlu0 %808
          %s811 = sor.u32 256, 72
          %812 = vbcast.lane.b32.xlu0 %v774, %s811
          %v813 = vpop.permute.xlu0 %812
          %s815 = sor.u32 256, 80
          %816 = vbcast.lane.b32.xlu0 %v774, %s815
          %v817 = vpop.permute.xlu0 %816
          %s819 = sor.u32 256, 88
          %820 = vbcast.lane.b32.xlu0 %v774, %s819
          %v821 = vpop.permute.xlu0 %820
          %s823 = sor.u32 256, 96
          %824 = vbcast.lane.b32.xlu0 %v774, %s823
          %v825 = vpop.permute.xlu0 %824
          %s827 = sor.u32 256, 104
          %828 = vbcast.lane.b32.xlu0 %v774, %s827
          %v829 = vpop.permute.xlu0 %828
          %s831 = sor.u32 256, 112
          %832 = vbcast.lane.b32.xlu0 %v774, %s831
          %v833 = vpop.permute.xlu0 %832
          %s835 = sor.u32 256, 120
          %836 = vbcast.lane.b32.xlu0 %v774, %s835
          %v837 = vpop.permute.xlu0 %836
          %v838 = vlaneseq
          %v839 = vshrl.u32 %v838, 7
          %v840 = vsub.s32 3, %v839
          %v841 = vrot.slane %v505, %v840
          %843 = vbcast.lane.b32.xlu0 %v841, 256
          %v844 = vpop.permute.xlu0 %843
          %s846 = sor.u32 256, 8
          %847 = vbcast.lane.b32.xlu0 %v841, %s846
          %v848 = vpop.permute.xlu0 %847
          %s850 = sor.u32 256, 16
          %851 = vbcast.lane.b32.xlu0 %v841, %s850
          %v852 = vpop.permute.xlu0 %851
          %s854 = sor.u32 256, 24
          %855 = vbcast.lane.b32.xlu0 %v841, %s854
          %v856 = vpop.permute.xlu0 %855
          %s858 = sor.u32 256, 32
          %859 = vbcast.lane.b32.xlu0 %v841, %s858
          %v860 = vpop.permute.xlu0 %859
          %s862 = sor.u32 256, 40
          %863 = vbcast.lane.b32.xlu0 %v841, %s862
          %v864 = vpop.permute.xlu0 %863
          %s866 = sor.u32 256, 48
          %867 = vbcast.lane.b32.xlu0 %v841, %s866
          %v868 = vpop.permute.xlu0 %867
          %s870 = sor.u32 256, 56
          %871 = vbcast.lane.b32.xlu0 %v841, %s870
          %v872 = vpop.permute.xlu0 %871
          %s874 = sor.u32 256, 64
          %875 = vbcast.lane.b32.xlu0 %v841, %s874
          %v876 = vpop.permute.xlu0 %875
          %s878 = sor.u32 256, 72
          %879 = vbcast.lane.b32.xlu0 %v841, %s878
          %v880 = vpop.permute.xlu0 %879
          %s882 = sor.u32 256, 80
          %883 = vbcast.lane.b32.xlu0 %v841, %s882
          %v884 = vpop.permute.xlu0 %883
          %s886 = sor.u32 256, 88
          %887 = vbcast.lane.b32.xlu0 %v841, %s886
          %v888 = vpop.permute.xlu0 %887
          %s890 = sor.u32 256, 96
          %891 = vbcast.lane.b32.xlu0 %v841, %s890
          %v892 = vpop.permute.xlu0 %891
          %s894 = sor.u32 256, 104
          %895 = vbcast.lane.b32.xlu0 %v841, %s894
          %v896 = vpop.permute.xlu0 %895
          %s898 = sor.u32 256, 112
          %899 = vbcast.lane.b32.xlu0 %v841, %s898
          %v900 = vpop.permute.xlu0 %899
          %s902 = sor.u32 256, 120
          %903 = vbcast.lane.b32.xlu0 %v841, %s902
          %v904 = vpop.permute.xlu0 %903
          %v905 = vlaneseq
          %v906 = vshrl.u32 %v905, 7
          %v907 = vsub.s32 4, %v906
          %v908 = vrot.slane %v505, %v907
          %910 = vbcast.lane.b32.xlu0 %v908, 256
          %v911 = vpop.permute.xlu0 %910
          %s913 = sor.u32 256, 8
          %914 = vbcast.lane.b32.xlu0 %v908, %s913
          %v915 = vpop.permute.xlu0 %914
          %s917 = sor.u32 256, 16
          %918 = vbcast.lane.b32.xlu0 %v908, %s917
          %v919 = vpop.permute.xlu0 %918
          %s921 = sor.u32 256, 24
          %922 = vbcast.lane.b32.xlu0 %v908, %s921
          %v923 = vpop.permute.xlu0 %922
          %s925 = sor.u32 256, 32
          %926 = vbcast.lane.b32.xlu0 %v908, %s925
          %v927 = vpop.permute.xlu0 %926
          %s929 = sor.u32 256, 40
          %930 = vbcast.lane.b32.xlu0 %v908, %s929
          %v931 = vpop.permute.xlu0 %930
          %s933 = sor.u32 256, 48
          %934 = vbcast.lane.b32.xlu0 %v908, %s933
          %v935 = vpop.permute.xlu0 %934
          %s937 = sor.u32 256, 56
          %938 = vbcast.lane.b32.xlu0 %v908, %s937
          %v939 = vpop.permute.xlu0 %938
          %s941 = sor.u32 256, 64
          %942 = vbcast.lane.b32.xlu0 %v908, %s941
          %v943 = vpop.permute.xlu0 %942
          %s945 = sor.u32 256, 72
          %946 = vbcast.lane.b32.xlu0 %v908, %s945
          %v947 = vpop.permute.xlu0 %946
          %s949 = sor.u32 256, 80
          %950 = vbcast.lane.b32.xlu0 %v908, %s949
          %v951 = vpop.permute.xlu0 %950
          %s953 = sor.u32 256, 88
          %954 = vbcast.lane.b32.xlu0 %v908, %s953
          %v955 = vpop.permute.xlu0 %954
          %s957 = sor.u32 256, 96
          %958 = vbcast.lane.b32.xlu0 %v908, %s957
          %v959 = vpop.permute.xlu0 %958
          %s961 = sor.u32 256, 104
          %962 = vbcast.lane.b32.xlu0 %v908, %s961
          %v963 = vpop.permute.xlu0 %962
          %s965 = sor.u32 256, 112
          %966 = vbcast.lane.b32.xlu0 %v908, %s965
          %v967 = vpop.permute.xlu0 %966
          %s969 = sor.u32 256, 120
          %970 = vbcast.lane.b32.xlu0 %v908, %s969
          %v971 = vpop.permute.xlu0 %970
          %v972 = vlaneseq
          %v973 = vshrl.u32 %v972, 7
          %v974 = vsub.s32 5, %v973
          %v975 = vrot.slane %v505, %v974
          %977 = vbcast.lane.b32.xlu0 %v975, 256
          %v978 = vpop.permute.xlu0 %977
          %s980 = sor.u32 256, 8
          %981 = vbcast.lane.b32.xlu0 %v975, %s980
          %v982 = vpop.permute.xlu0 %981
          %s984 = sor.u32 256, 16
          %985 = vbcast.lane.b32.xlu0 %v975, %s984
          %v986 = vpop.permute.xlu0 %985
          %s988 = sor.u32 256, 24
          %989 = vbcast.lane.b32.xlu0 %v975, %s988
          %v990 = vpop.permute.xlu0 %989
          %s992 = sor.u32 256, 32
          %993 = vbcast.lane.b32.xlu0 %v975, %s992
          %v994 = vpop.permute.xlu0 %993
          %s996 = sor.u32 256, 40
          %997 = vbcast.lane.b32.xlu0 %v975, %s996
          %v998 = vpop.permute.xlu0 %997
          %s1000 = sor.u32 256, 48
          %1001 = vbcast.lane.b32.xlu0 %v975, %s1000
          %v1002 = vpop.permute.xlu0 %1001
          %s1004 = sor.u32 256, 56
          %1005 = vbcast.lane.b32.xlu0 %v975, %s1004
          %v1006 = vpop.permute.xlu0 %1005
          %s1008 = sor.u32 256, 64
          %1009 = vbcast.lane.b32.xlu0 %v975, %s1008
          %v1010 = vpop.permute.xlu0 %1009
          %s1012 = sor.u32 256, 72
          %1013 = vbcast.lane.b32.xlu0 %v975, %s1012
          %v1014 = vpop.permute.xlu0 %1013
          %s1016 = sor.u32 256, 80
          %1017 = vbcast.lane.b32.xlu0 %v975, %s1016
          %v1018 = vpop.permute.xlu0 %1017
          %s1020 = sor.u32 256, 88
          %1021 = vbcast.lane.b32.xlu0 %v975, %s1020
          %v1022 = vpop.permute.xlu0 %1021
          %s1024 = sor.u32 256, 96
          %1025 = vbcast.lane.b32.xlu0 %v975, %s1024
          %v1026 = vpop.permute.xlu0 %1025
          %s1028 = sor.u32 256, 104
          %1029 = vbcast.lane.b32.xlu0 %v975, %s1028
          %v1030 = vpop.permute.xlu0 %1029
          %s1032 = sor.u32 256, 112
          %1033 = vbcast.lane.b32.xlu0 %v975, %s1032
          %v1034 = vpop.permute.xlu0 %1033
          %s1036 = sor.u32 256, 120
          %1037 = vbcast.lane.b32.xlu0 %v975, %s1036
          %v1038 = vpop.permute.xlu0 %1037
          %v1039 = vlaneseq
          %v1040 = vshrl.u32 %v1039, 7
          %v1041 = vsub.s32 6, %v1040
          %v1042 = vrot.slane %v505, %v1041
          %1044 = vbcast.lane.b32.xlu0 %v1042, 256
          %v1045 = vpop.permute.xlu0 %1044
          %s1047 = sor.u32 256, 8
          %1048 = vbcast.lane.b32.xlu0 %v1042, %s1047
          %v1049 = vpop.permute.xlu0 %1048
          %s1051 = sor.u32 256, 16
          %1052 = vbcast.lane.b32.xlu0 %v1042, %s1051
          %v1053 = vpop.permute.xlu0 %1052
          %s1055 = sor.u32 256, 24
          %1056 = vbcast.lane.b32.xlu0 %v1042, %s1055
          %v1057 = vpop.permute.xlu0 %1056
          %s1059 = sor.u32 256, 32
          %1060 = vbcast.lane.b32.xlu0 %v1042, %s1059
          %v1061 = vpop.permute.xlu0 %1060
          %s1063 = sor.u32 256, 40
          %1064 = vbcast.lane.b32.xlu0 %v1042, %s1063
          %v1065 = vpop.permute.xlu0 %1064
          %s1067 = sor.u32 256, 48
          %1068 = vbcast.lane.b32.xlu0 %v1042, %s1067
          %v1069 = vpop.permute.xlu0 %1068
          %s1071 = sor.u32 256, 56
          %1072 = vbcast.lane.b32.xlu0 %v1042, %s1071
          %v1073 = vpop.permute.xlu0 %1072
          %s1075 = sor.u32 256, 64
          %1076 = vbcast.lane.b32.xlu0 %v1042, %s1075
          %v1077 = vpop.permute.xlu0 %1076
          %s1079 = sor.u32 256, 72
          %1080 = vbcast.lane.b32.xlu0 %v1042, %s1079
          %v1081 = vpop.permute.xlu0 %1080
          %s1083 = sor.u32 256, 80
          %1084 = vbcast.lane.b32.xlu0 %v1042, %s1083
          %v1085 = vpop.permute.xlu0 %1084
          %s1087 = sor.u32 256, 88
          %1088 = vbcast.lane.b32.xlu0 %v1042, %s1087
          %v1089 = vpop.permute.xlu0 %1088
          %s1091 = sor.u32 256, 96
          %1092 = vbcast.lane.b32.xlu0 %v1042, %s1091
          %v1093 = vpop.permute.xlu0 %1092
          %s1095 = sor.u32 256, 104
          %1096 = vbcast.lane.b32.xlu0 %v1042, %s1095
          %v1097 = vpop.permute.xlu0 %1096
          %s1099 = sor.u32 256, 112
          %1100 = vbcast.lane.b32.xlu0 %v1042, %s1099
          %v1101 = vpop.permute.xlu0 %1100
          %s1103 = sor.u32 256, 120
          %1104 = vbcast.lane.b32.xlu0 %v1042, %s1103
          %v1105 = vpop.permute.xlu0 %1104
          %v1106 = vlaneseq
          %v1107 = vshrl.u32 %v1106, 7
          %v1108 = vsub.s32 7, %v1107
          %v1109 = vrot.slane %v505, %v1108
          %1111 = vbcast.lane.b32.xlu0 %v1109, 256
          %v1112 = vpop.permute.xlu0 %1111
          %s1114 = sor.u32 256, 8
          %1115 = vbcast.lane.b32.xlu0 %v1109, %s1114
          %v1116 = vpop.permute.xlu0 %1115
          %s1118 = sor.u32 256, 16
          %1119 = vbcast.lane.b32.xlu0 %v1109, %s1118
          %v1120 = vpop.permute.xlu0 %1119
          %s1122 = sor.u32 256, 24
          %1123 = vbcast.lane.b32.xlu0 %v1109, %s1122
          %v1124 = vpop.permute.xlu0 %1123
          %s1126 = sor.u32 256, 32
          %1127 = vbcast.lane.b32.xlu0 %v1109, %s1126
          %v1128 = vpop.permute.xlu0 %1127
          %s1130 = sor.u32 256, 40
          %1131 = vbcast.lane.b32.xlu0 %v1109, %s1130
          %v1132 = vpop.permute.xlu0 %1131
          %s1134 = sor.u32 256, 48
          %1135 = vbcast.lane.b32.xlu0 %v1109, %s1134
          %v1136 = vpop.permute.xlu0 %1135
          %s1138 = sor.u32 256, 56
          %1139 = vbcast.lane.b32.xlu0 %v1109, %s1138
          %v1140 = vpop.permute.xlu0 %1139
          %s1142 = sor.u32 256, 64
          %1143 = vbcast.lane.b32.xlu0 %v1109, %s1142
          %v1144 = vpop.permute.xlu0 %1143
          %s1146 = sor.u32 256, 72
          %1147 = vbcast.lane.b32.xlu0 %v1109, %s1146
          %v1148 = vpop.permute.xlu0 %1147
          %s1150 = sor.u32 256, 80
          %1151 = vbcast.lane.b32.xlu0 %v1109, %s1150
          %v1152 = vpop.permute.xlu0 %1151
          %s1154 = sor.u32 256, 88
          %1155 = vbcast.lane.b32.xlu0 %v1109, %s1154
          %v1156 = vpop.permute.xlu0 %1155
          %s1158 = sor.u32 256, 96
          %1159 = vbcast.lane.b32.xlu0 %v1109, %s1158
          %v1160 = vpop.permute.xlu0 %1159
          %s1162 = sor.u32 256, 104
          %1163 = vbcast.lane.b32.xlu0 %v1109, %s1162
          %v1164 = vpop.permute.xlu0 %1163
          %s1166 = sor.u32 256, 112
          %1167 = vbcast.lane.b32.xlu0 %v1109, %s1166
          %v1168 = vpop.permute.xlu0 %1167
          %s1170 = sor.u32 256, 120
          %1171 = vbcast.lane.b32.xlu0 %v1109, %s1170
          %v1172 = vpop.permute.xlu0 %1171
          %v1173 = vmul.f32 %v508, %v643
          %v1174 = vmul.f32 %v509, %v647
          %v1175 = vmul.f32 %v510, %v651
          %v1176 = vmul.f32 %v511, %v655
          %v1177 = vmul.f32 %v512, %v659
          %v1178 = vmul.f32 %v513, %v663
          %v1179 = vmul.f32 %v514, %v667
          %v1180 = vmul.f32 %v515, %v671
          %v1181 = vmul.f32 %v516, %v675
          %v1182 = vmul.f32 %v517, %v679
          %v1183 = vmul.f32 %v518, %v683
          %v1184 = vmul.f32 %v519, %v687
          %v1185 = vmul.f32 %v520, %v691
          %v1186 = vmul.f32 %v521, %v695
          %v1187 = vmul.f32 %v522, %v699
          %v1188 = vmul.f32 %v523, %v703
          %v1189 = vmul.f32 %v524, %v710
          %v1190 = vmul.f32 %v525, %v714
          %v1191 = vmul.f32 %v526, %v718
          %v1192 = vmul.f32 %v527, %v722
          %v1193 = vmul.f32 %v528, %v726
          %v1194 = vmul.f32 %v529, %v730
          %v1195 = vmul.f32 %v530, %v734
          %v1196 = vmul.f32 %v531, %v738
          %v1197 = vmul.f32 %v532, %v742
          %v1198 = vmul.f32 %v533, %v746
          %v1199 = vmul.f32 %v534, %v750
          %v1200 = vmul.f32 %v535, %v754
          %v1201 = vmul.f32 %v536, %v758
          %v1202 = vmul.f32 %v537, %v762
          %v1203 = vmul.f32 %v538, %v766
          %v1204 = vmul.f32 %v539, %v770
          %v1205 = vmul.f32 %v540, %v777
          %v1206 = vmul.f32 %v541, %v781
          %v1207 = vmul.f32 %v542, %v785
          %v1208 = vmul.f32 %v543, %v789
          %v1209 = vmul.f32 %v544, %v793
          %v1210 = vmul.f32 %v545, %v797
          %v1211 = vmul.f32 %v546, %v801
          %v1212 = vmul.f32 %v547, %v805
          %v1213 = vmul.f32 %v548, %v809
          %v1214 = vmul.f32 %v549, %v813
          %v1215 = vmul.f32 %v550, %v817
          %v1216 = vmul.f32 %v551, %v821
          %v1217 = vmul.f32 %v552, %v825
          %v1218 = vmul.f32 %v553, %v829
          %v1219 = vmul.f32 %v554, %v833
          %v1220 = vmul.f32 %v555, %v837
          %v1221 = vmul.f32 %v556, %v844
          %v1222 = vmul.f32 %v557, %v848
          %v1223 = vmul.f32 %v558, %v852
          %v1224 = vmul.f32 %v559, %v856
          %v1225 = vmul.f32 %v560, %v860
          %v1226 = vmul.f32 %v561, %v864
          %v1227 = vmul.f32 %v562, %v868
          %v1228 = vmul.f32 %v563, %v872
          %v1229 = vmul.f32 %v564, %v876
          %v1230 = vmul.f32 %v565, %v880
          %v1231 = vmul.f32 %v566, %v884
          %v1232 = vmul.f32 %v567, %v888
          %v1233 = vmul.f32 %v568, %v892
          %v1234 = vmul.f32 %v569, %v896
          %v1235 = vmul.f32 %v570, %v900
          %v1236 = vmul.f32 %v571, %v904
          %v1237 = vmul.f32 %v572, %v911
          %v1238 = vmul.f32 %v573, %v915
          %v1239 = vmul.f32 %v574, %v919
          %v1240 = vmul.f32 %v575, %v923
          %v1241 = vmul.f32 %v576, %v927
          %v1242 = vmul.f32 %v577, %v931
          %v1243 = vmul.f32 %v578, %v935
          %v1244 = vmul.f32 %v579, %v939
          %v1245 = vmul.f32 %v580, %v943
          %v1246 = vmul.f32 %v581, %v947
          %v1247 = vmul.f32 %v582, %v951
          %v1248 = vmul.f32 %v583, %v955
          %v1249 = vmul.f32 %v584, %v959
          %v1250 = vmul.f32 %v585, %v963
          %v1251 = vmul.f32 %v586, %v967
          %v1252 = vmul.f32 %v587, %v971
          %v1253 = vmul.f32 %v588, %v978
          %v1254 = vmul.f32 %v589, %v982
          %v1255 = vmul.f32 %v590, %v986
          %v1256 = vmul.f32 %v591, %v990
          %v1257 = vmul.f32 %v592, %v994
          %v1258 = vmul.f32 %v593, %v998
          %v1259 = vmul.f32 %v594, %v1002
          %v1260 = vmul.f32 %v595, %v1006
          %v1261 = vmul.f32 %v596, %v1010
          %v1262 = vmul.f32 %v597, %v1014
          %v1263 = vmul.f32 %v598, %v1018
          %v1264 = vmul.f32 %v599, %v1022
          %v1265 = vmul.f32 %v600, %v1026
          %v1266 = vmul.f32 %v601, %v1030
          %v1267 = vmul.f32 %v602, %v1034
          %v1268 = vmul.f32 %v603, %v1038
          %v1269 = vmul.f32 %v604, %v1045
          %v1270 = vmul.f32 %v605, %v1049
          %v1271 = vmul.f32 %v606, %v1053
          %v1272 = vmul.f32 %v607, %v1057
          %v1273 = vmul.f32 %v608, %v1061
          %v1274 = vmul.f32 %v609, %v1065
          %v1275 = vmul.f32 %v610, %v1069
          %v1276 = vmul.f32 %v611, %v1073
          %v1277 = vmul.f32 %v612, %v1077
          %v1278 = vmul.f32 %v613, %v1081
          %v1279 = vmul.f32 %v614, %v1085
          %v1280 = vmul.f32 %v615, %v1089
          %v1281 = vmul.f32 %v616, %v1093
          %v1282 = vmul.f32 %v617, %v1097
          %v1283 = vmul.f32 %v618, %v1101
          %v1284 = vmul.f32 %v619, %v1105
          %v1285 = vmul.f32 %v620, %v1112
          %v1286 = vmul.f32 %v621, %v1116
          %v1287 = vmul.f32 %v622, %v1120
          %v1288 = vmul.f32 %v623, %v1124
          %v1289 = vmul.f32 %v624, %v1128
          %v1290 = vmul.f32 %v625, %v1132
          %v1291 = vmul.f32 %v626, %v1136
          %v1292 = vmul.f32 %v627, %v1140
          %v1293 = vmul.f32 %v628, %v1144
          %v1294 = vmul.f32 %v629, %v1148
          %v1295 = vmul.f32 %v630, %v1152
          %v1296 = vmul.f32 %v631, %v1156
          %v1297 = vmul.f32 %v632, %v1160
          %v1298 = vmul.f32 %v633, %v1164
          %v1299 = vmul.f32 %v634, %v1168
          %v1300 = vmul.f32 %v635, %v1172
          %v1301 = vadd.f32 %v1173, %v1174
          %v1302 = vadd.f32 %v1301, %v1175
          %v1303 = vadd.f32 %v1302, %v1176
          %v1304 = vadd.f32 %v1303, %v1177
          %v1305 = vadd.f32 %v1304, %v1178
          %v1306 = vadd.f32 %v1305, %v1179
          %v1307 = vadd.f32 %v1306, %v1180
          %v1308 = vadd.f32 %v1307, %v1181
          %v1309 = vadd.f32 %v1308, %v1182
          %v1310 = vadd.f32 %v1309, %v1183
          %v1311 = vadd.f32 %v1310, %v1184
          %v1312 = vadd.f32 %v1311, %v1185
          %v1313 = vadd.f32 %v1312, %v1186
          %v1314 = vadd.f32 %v1313, %v1187
          %v1315 = vadd.f32 %v1314, %v1188
          %v1316 = vrot.slane %v1315, 4
          %v1317 = vadd.f32 %v1315, %v1316
          %v1318 = vrot.slane %v1317, 2
          %v1319 = vadd.f32 %v1317, %v1318
          %v1320 = vrot.slane %v1319, 1
          %v1321 = vadd.f32 %v1319, %v1320
          %v1322 = vadd.f32 %v1189, %v1190
          %v1323 = vadd.f32 %v1322, %v1191
          %v1324 = vadd.f32 %v1323, %v1192
          %v1325 = vadd.f32 %v1324, %v1193
          %v1326 = vadd.f32 %v1325, %v1194
          %v1327 = vadd.f32 %v1326, %v1195
          %v1328 = vadd.f32 %v1327, %v1196
          %v1329 = vadd.f32 %v1328, %v1197
          %v1330 = vadd.f32 %v1329, %v1198
          %v1331 = vadd.f32 %v1330, %v1199
          %v1332 = vadd.f32 %v1331, %v1200
          %v1333 = vadd.f32 %v1332, %v1201
          %v1334 = vadd.f32 %v1333, %v1202
          %v1335 = vadd.f32 %v1334, %v1203
          %v1336 = vadd.f32 %v1335, %v1204
          %v1337 = vrot.slane %v1336, 4
          %v1338 = vadd.f32 %v1336, %v1337
          %v1339 = vrot.slane %v1338, 2
          %v1340 = vadd.f32 %v1338, %v1339
          %v1341 = vrot.slane %v1340, 1
          %v1342 = vadd.f32 %v1340, %v1341
          %v1343 = vadd.f32 %v1205, %v1206
          %v1344 = vadd.f32 %v1343, %v1207
          %v1345 = vadd.f32 %v1344, %v1208
          %v1346 = vadd.f32 %v1345, %v1209
          %v1347 = vadd.f32 %v1346, %v1210
          %v1348 = vadd.f32 %v1347, %v1211
          %v1349 = vadd.f32 %v1348, %v1212
          %v1350 = vadd.f32 %v1349, %v1213
          %v1351 = vadd.f32 %v1350, %v1214
          %v1352 = vadd.f32 %v1351, %v1215
          %v1353 = vadd.f32 %v1352, %v1216
          %v1354 = vadd.f32 %v1353, %v1217
          %v1355 = vadd.f32 %v1354, %v1218
          %v1356 = vadd.f32 %v1355, %v1219
          %v1357 = vadd.f32 %v1356, %v1220
          %v1358 = vrot.slane %v1357, 4
          %v1359 = vadd.f32 %v1357, %v1358
          %v1360 = vrot.slane %v1359, 2
          %v1361 = vadd.f32 %v1359, %v1360
          %v1362 = vrot.slane %v1361, 1
          %v1363 = vadd.f32 %v1361, %v1362
          %v1364 = vadd.f32 %v1221, %v1222
          %v1365 = vadd.f32 %v1364, %v1223
          %v1366 = vadd.f32 %v1365, %v1224
          %v1367 = vadd.f32 %v1366, %v1225
          %v1368 = vadd.f32 %v1367, %v1226
          %v1369 = vadd.f32 %v1368, %v1227
          %v1370 = vadd.f32 %v1369, %v1228
          %v1371 = vadd.f32 %v1370, %v1229
          %v1372 = vadd.f32 %v1371, %v1230
          %v1373 = vadd.f32 %v1372, %v1231
          %v1374 = vadd.f32 %v1373, %v1232
          %v1375 = vadd.f32 %v1374, %v1233
          %v1376 = vadd.f32 %v1375, %v1234
          %v1377 = vadd.f32 %v1376, %v1235
          %v1378 = vadd.f32 %v1377, %v1236
          %v1379 = vrot.slane %v1378, 4
          %v1380 = vadd.f32 %v1378, %v1379
          %v1381 = vrot.slane %v1380, 2
          %v1382 = vadd.f32 %v1380, %v1381
          %v1383 = vrot.slane %v1382, 1
          %v1384 = vadd.f32 %v1382, %v1383
          %v1385 = vadd.f32 %v1237, %v1238
          %v1386 = vadd.f32 %v1385, %v1239
          %v1387 = vadd.f32 %v1386, %v1240
          %v1388 = vadd.f32 %v1387, %v1241
          %v1389 = vadd.f32 %v1388, %v1242
          %v1390 = vadd.f32 %v1389, %v1243
          %v1391 = vadd.f32 %v1390, %v1244
          %v1392 = vadd.f32 %v1391, %v1245
          %v1393 = vadd.f32 %v1392, %v1246
          %v1394 = vadd.f32 %v1393, %v1247
          %v1395 = vadd.f32 %v1394, %v1248
          %v1396 = vadd.f32 %v1395, %v1249
          %v1397 = vadd.f32 %v1396, %v1250
          %v1398 = vadd.f32 %v1397, %v1251
          %v1399 = vadd.f32 %v1398, %v1252
          %v1400 = vrot.slane %v1399, 4
          %v1401 = vadd.f32 %v1399, %v1400
          %v1402 = vrot.slane %v1401, 2
          %v1403 = vadd.f32 %v1401, %v1402
          %v1404 = vrot.slane %v1403, 1
          %v1405 = vadd.f32 %v1403, %v1404
          %v1406 = vadd.f32 %v1253, %v1254
          %v1407 = vadd.f32 %v1406, %v1255
          %v1408 = vadd.f32 %v1407, %v1256
          %v1409 = vadd.f32 %v1408, %v1257
          %v1410 = vadd.f32 %v1409, %v1258
          %v1411 = vadd.f32 %v1410, %v1259
          %v1412 = vadd.f32 %v1411, %v1260
          %v1413 = vadd.f32 %v1412, %v1261
          %v1414 = vadd.f32 %v1413, %v1262
          %v1415 = vadd.f32 %v1414, %v1263
          %v1416 = vadd.f32 %v1415, %v1264
          %v1417 = vadd.f32 %v1416, %v1265
          %v1418 = vadd.f32 %v1417, %v1266
          %v1419 = vadd.f32 %v1418, %v1267
          %v1420 = vadd.f32 %v1419, %v1268
          %v1421 = vrot.slane %v1420, 4
          %v1422 = vadd.f32 %v1420, %v1421
          %v1423 = vrot.slane %v1422, 2
          %v1424 = vadd.f32 %v1422, %v1423
          %v1425 = vrot.slane %v1424, 1
          %v1426 = vadd.f32 %v1424, %v1425
          %v1427 = vadd.f32 %v1269, %v1270
          %v1428 = vadd.f32 %v1427, %v1271
          %v1429 = vadd.f32 %v1428, %v1272
          %v1430 = vadd.f32 %v1429, %v1273
          %v1431 = vadd.f32 %v1430, %v1274
          %v1432 = vadd.f32 %v1431, %v1275
          %v1433 = vadd.f32 %v1432, %v1276
          %v1434 = vadd.f32 %v1433, %v1277
          %v1435 = vadd.f32 %v1434, %v1278
          %v1436 = vadd.f32 %v1435, %v1279
          %v1437 = vadd.f32 %v1436, %v1280
          %v1438 = vadd.f32 %v1437, %v1281
          %v1439 = vadd.f32 %v1438, %v1282
          %v1440 = vadd.f32 %v1439, %v1283
          %v1441 = vadd.f32 %v1440, %v1284
          %v1442 = vrot.slane %v1441, 4
          %v1443 = vadd.f32 %v1441, %v1442
          %v1444 = vrot.slane %v1443, 2
          %v1445 = vadd.f32 %v1443, %v1444
          %v1446 = vrot.slane %v1445, 1
          %v1447 = vadd.f32 %v1445, %v1446
          %v1448 = vadd.f32 %v1285, %v1286
          %v1449 = vadd.f32 %v1448, %v1287
          %v1450 = vadd.f32 %v1449, %v1288
          %v1451 = vadd.f32 %v1450, %v1289
          %v1452 = vadd.f32 %v1451, %v1290
          %v1453 = vadd.f32 %v1452, %v1291
          %v1454 = vadd.f32 %v1453, %v1292
          %v1455 = vadd.f32 %v1454, %v1293
          %v1456 = vadd.f32 %v1455, %v1294
          %v1457 = vadd.f32 %v1456, %v1295
          %v1458 = vadd.f32 %v1457, %v1296
          %v1459 = vadd.f32 %v1458, %v1297
          %v1460 = vadd.f32 %v1459, %v1298
          %v1461 = vadd.f32 %v1460, %v1299
          %v1462 = vadd.f32 %v1461, %v1300
          %v1463 = vrot.slane %v1462, 4
          %v1464 = vadd.f32 %v1462, %v1463
          %v1465 = vrot.slane %v1464, 2
          %v1466 = vadd.f32 %v1464, %v1465
          %v1467 = vrot.slane %v1466, 1
          %v1468 = vadd.f32 %v1466, %v1467
          %vm1477 = vcmask 1041409
          %v1478 = vsel %vm1477, %v1342, %v1321
          %vm1479 = vcmask 1042434
          %v1480 = vsel %vm1479, %v1363, %v1478
          %vm1481 = vcmask 1043459
          %v1482 = vsel %vm1481, %v1384, %v1480
          %vm1483 = vcmask 1044484
          %v1484 = vsel %vm1483, %v1405, %v1482
          %vm1485 = vcmask 1045509
          %v1486 = vsel %vm1485, %v1426, %v1484
          %vm1487 = vcmask 1046534
          %v1488 = vsel %vm1487, %v1447, %v1486
          %vm1489 = vcmask 1047559
          %v1490 = vsel %vm1489, %v1468, %v1488
          %v1492 = vadd.f32 %v636, %v1490
          %1493 = vst [vmem:[#allocation3] sm:$0xff] %v1492
          %v1494 = vld [vmem:[#allocation4] sm:$0xff]
          %1495 = vadd.xlane.f32.xlu0 %v505
          %v1496 = vpop.xlane.xlu0 %1495
          %v1497 = vadd.f32 %v1494, %v1496
          %vm1498 = vcmask 7168
          %1499 = vst.msk [vmem:[#allocation4] sm:$0xff] %vm1498, %v1497
        $region116: #{tpu_custom_call.1} parent=47 // pred_fallthru
          _
        %p1500 = scmp.eq.s32.totalorder %s42, 1
        // Predicated region
        $region124: #{tpu_custom_call.1} parent=47 // pred_check
          %p1501 = pneg %p1500
        $region125: #{tpu_custom_call.1} parent=47 // pred_check_branch
          %1503 = sbr.rel (%p1501) target = $region127
        $region126: #{tpu_custom_call.1} parent=47 // pred_region
          %v1504 = vld [vmem:[#allocation4] sm:$0xff]
          %v1505 = vmax.f32 %v1504, 1.0
          %v1506 = vld [vmem:[#allocation3] sm:$0xff]
          %1508 = vset.pattern.permute.xlu0 0
          %1509 = vperm.xlu0 %1508, %v1505
          %v1510 = vpop.permute.xlu0 %1509
          %v1512 = vrcp.pop %v1510
          %v1513 = vmul.f32 %v1506, %v1512
          %v1514 = vld [vmem:[#allocation12] sm:$0xff]
          %v1515 = vld [vmem:[#allocation12 + $0x8] sm:$0xff]
          %v1516 = vld [vmem:[#allocation12 + $0x10] sm:$0xff]
          %v1517 = vld [vmem:[#allocation12 + $0x18] sm:$0xff]
          %v1518 = vld [vmem:[#allocation12 + $0x20] sm:$0xff]
          %v1519 = vld [vmem:[#allocation12 + $0x28] sm:$0xff]
          %v1520 = vld [vmem:[#allocation12 + $0x30] sm:$0xff]
          %v1521 = vld [vmem:[#allocation12 + $0x38] sm:$0xff]
          %v1522 = vld [vmem:[#allocation12 + $0x40] sm:$0xff]
          %v1523 = vld [vmem:[#allocation12 + $0x48] sm:$0xff]
          %v1524 = vld [vmem:[#allocation12 + $0x50] sm:$0xff]
          %v1525 = vld [vmem:[#allocation12 + $0x58] sm:$0xff]
          %v1526 = vld [vmem:[#allocation12 + $0x60] sm:$0xff]
          %v1527 = vld [vmem:[#allocation12 + $0x68] sm:$0xff]
          %v1528 = vld [vmem:[#allocation12 + $0x70] sm:$0xff]
          %v1529 = vld [vmem:[#allocation12 + $0x78] sm:$0xff]
          %v1530 = vld [vmem:[%s5] sm:$0x1]
          %v1532 = vlaneseq
          %v1533 = vshrl.u32 %v1532, 7
          %v1534 = vsub.s32 0, %v1533
          %v1535 = vrot.slane %v1530, %v1534
          %1537 = vmatprep.subr.mxu0 0.0
          %1538 = vmatpush1.msra.mxu0 %v1514
          %1539 = vmatprep.subr.mxu0 0.0
          %1540 = vmatpush1.msra.mxu0 %v1515
          %1541 = vmatprep.subr.mxu0 0.0
          %1542 = vmatpush1.msra.mxu0 %v1516
          %1543 = vmatprep.subr.mxu0 0.0
          %1544 = vmatpush1.msra.mxu0 %v1517
          %1545 = vmatprep.subr.mxu0 0.0
          %1546 = vmatpush1.msra.mxu0 %v1518
          %1547 = vmatprep.subr.mxu0 0.0
          %1548 = vmatpush1.msra.mxu0 %v1519
          %1549 = vmatprep.subr.mxu0 0.0
          %1550 = vmatpush1.msra.mxu0 %v1520
          %1551 = vmatprep.subr.mxu0 0.0
          %1552 = vmatpush1.msra.mxu0 %v1521
          %1553 = vmatprep.subr.mxu0 0.0
          %1554 = vmatpush1.msra.mxu0 %v1522
          %1555 = vmatprep.subr.mxu0 0.0
          %1556 = vmatpush1.msra.mxu0 %v1523
          %1557 = vmatprep.subr.mxu0 0.0
          %1558 = vmatpush1.msra.mxu0 %v1524
          %1559 = vmatprep.subr.mxu0 0.0
          %1560 = vmatpush1.msra.mxu0 %v1525
          %1561 = vmatprep.subr.mxu0 0.0
          %1562 = vmatpush1.msra.mxu0 %v1526
          %1563 = vmatprep.subr.mxu0 0.0
          %1564 = vmatpush1.msra.mxu0 %v1527
          %1565 = vmatprep.subr.mxu0 0.0
          %1566 = vmatpush1.msra.mxu0 %v1528
          %1567 = vmatprep.subr.mxu0 0.0
          %1568 = vmatpush1.msra.mxu0 %v1529
          %1569 = vmatprep.subr.mxu0 0.0
          %1570 = vmatpush1.msra.mxu0 0.0
          %1571 = vmatprep.subr.mxu0 0.0
          %1572 = vmatpush1.msra.mxu0 0.0
          %1573 = vmatprep.subr.mxu0 0.0
          %1574 = vmatpush1.msra.mxu0 0.0
          %1575 = vmatprep.subr.mxu0 0.0
          %1576 = vmatpush1.msra.mxu0 0.0
          %1577 = vmatprep.subr.mxu0 0.0
          %1578 = vmatpush1.msra.mxu0 0.0
          %1579 = vmatprep.subr.mxu0 0.0
          %1580 = vmatpush1.msra.mxu0 0.0
          %1581 = vmatprep.subr.mxu0 0.0
          %1582 = vmatpush1.msra.mxu0 0.0
          %1583 = vmatprep.subr.mxu0 0.0
          %1584 = vmatpush1.msra.mxu0 0.0
          %1585 = vmatprep.subr.mxu0 0.0
          %1586 = vmatpush1.msra.mxu0 0.0
          %1587 = vmatprep.subr.mxu0 0.0
          %1588 = vmatpush1.msra.mxu0 0.0
          %1589 = vmatprep.subr.mxu0 0.0
          %1590 = vmatpush1.msra.mxu0 0.0
          %1591 = vmatprep.subr.mxu0 0.0
          %1592 = vmatpush1.msra.mxu0 0.0
          %1593 = vmatprep.subr.mxu0 0.0
          %1594 = vmatpush1.msra.mxu0 0.0
          %1595 = vmatprep.subr.mxu0 0.0
          %1596 = vmatpush1.msra.mxu0 0.0
          %1597 = vmatprep.subr.mxu0 0.0
          %1598 = vmatpush1.msra.mxu0 0.0
          %1599 = vmatprep.subr.mxu0 0.0
          %1600 = vmatpush1.msra.mxu0 0.0
          %1601 = vmatprep.mubr.f32.mxu0 0.0
          %1602 = vmatmul.mubr.f32.gmra.mrb[0].mxu0 %v1513
          %v1603 = vpop.f32.mrb[0].mxu0
          %v1604 = vadd.f32 %v1535, %v1603
          %v1605 = vpop.f32.mrb[0].mxu0
          %1606 = vdwg.mxu0
          %v1607 = vtanh.pop %v1604
          %v1608 = vld [vmem:[#allocation14] sm:$0xff]
          %v1609 = vld [vmem:[#allocation14 + $0x8] sm:$0xff]
          %v1610 = vld [vmem:[#allocation14 + $0x10] sm:$0xff]
          %v1611 = vld [vmem:[#allocation14 + $0x18] sm:$0xff]
          %v1612 = vld [vmem:[#allocation14 + $0x20] sm:$0xff]
          %v1613 = vld [vmem:[#allocation14 + $0x28] sm:$0xff]
          %v1614 = vld [vmem:[#allocation14 + $0x30] sm:$0xff]
          %v1615 = vld [vmem:[#allocation14 + $0x38] sm:$0xff]
          %v1616 = vld [vmem:[#allocation14 + $0x40] sm:$0xff]
          %v1617 = vld [vmem:[#allocation14 + $0x48] sm:$0xff]
          %v1618 = vld [vmem:[#allocation14 + $0x50] sm:$0xff]
          %v1619 = vld [vmem:[#allocation14 + $0x58] sm:$0xff]
          %v1620 = vld [vmem:[#allocation14 + $0x60] sm:$0xff]
          %v1621 = vld [vmem:[#allocation14 + $0x68] sm:$0xff]
          %v1622 = vld [vmem:[#allocation14 + $0x70] sm:$0xff]
          %v1623 = vld [vmem:[#allocation14 + $0x78] sm:$0xff]
          %v1624 = vld [vmem:[%s7] sm:$0x1]
          %v1626 = vlaneseq
          %v1627 = vshrl.u32 %v1626, 7
          %v1628 = vsub.s32 0, %v1627
          %v1629 = vrot.slane %v1624, %v1628
          %1631 = vmatprep.subr.mxu0 0.0
          %1632 = vmatpush1.msra.mxu0 %v1608
          %1633 = vmatprep.subr.mxu0 0.0
          %1634 = vmatpush1.msra.mxu0 %v1609
          %1635 = vmatprep.subr.mxu0 0.0
          %1636 = vmatpush1.msra.mxu0 %v1610
          %1637 = vmatprep.subr.mxu0 0.0
          %1638 = vmatpush1.msra.mxu0 %v1611
          %1639 = vmatprep.subr.mxu0 0.0
          %1640 = vmatpush1.msra.mxu0 %v1612
          %1641 = vmatprep.subr.mxu0 0.0
          %1642 = vmatpush1.msra.mxu0 %v1613
          %1643 = vmatprep.subr.mxu0 0.0
          %1644 = vmatpush1.msra.mxu0 %v1614
          %1645 = vmatprep.subr.mxu0 0.0
          %1646 = vmatpush1.msra.mxu0 %v1615
          %1647 = vmatprep.subr.mxu0 0.0
          %1648 = vmatpush1.msra.mxu0 %v1616
          %1649 = vmatprep.subr.mxu0 0.0
          %1650 = vmatpush1.msra.mxu0 %v1617
          %1651 = vmatprep.subr.mxu0 0.0
          %1652 = vmatpush1.msra.mxu0 %v1618
          %1653 = vmatprep.subr.mxu0 0.0
          %1654 = vmatpush1.msra.mxu0 %v1619
          %1655 = vmatprep.subr.mxu0 0.0
          %1656 = vmatpush1.msra.mxu0 %v1620
          %1657 = vmatprep.subr.mxu0 0.0
          %1658 = vmatpush1.msra.mxu0 %v1621
          %1659 = vmatprep.subr.mxu0 0.0
          %1660 = vmatpush1.msra.mxu0 %v1622
          %1661 = vmatprep.subr.mxu0 0.0
          %1662 = vmatpush1.msra.mxu0 %v1623
          %1663 = vmatprep.subr.mxu0 0.0
          %1664 = vmatpush1.msra.mxu0 0.0
          %1665 = vmatprep.subr.mxu0 0.0
          %1666 = vmatpush1.msra.mxu0 0.0
          %1667 = vmatprep.subr.mxu0 0.0
          %1668 = vmatpush1.msra.mxu0 0.0
          %1669 = vmatprep.subr.mxu0 0.0
          %1670 = vmatpush1.msra.mxu0 0.0
          %1671 = vmatprep.subr.mxu0 0.0
          %1672 = vmatpush1.msra.mxu0 0.0
          %1673 = vmatprep.subr.mxu0 0.0
          %1674 = vmatpush1.msra.mxu0 0.0
          %1675 = vmatprep.subr.mxu0 0.0
          %1676 = vmatpush1.msra.mxu0 0.0
          %1677 = vmatprep.subr.mxu0 0.0
          %1678 = vmatpush1.msra.mxu0 0.0
          %1679 = vmatprep.subr.mxu0 0.0
          %1680 = vmatpush1.msra.mxu0 0.0
          %1681 = vmatprep.subr.mxu0 0.0
          %1682 = vmatpush1.msra.mxu0 0.0
          %1683 = vmatprep.subr.mxu0 0.0
          %1684 = vmatpush1.msra.mxu0 0.0
          %1685 = vmatprep.subr.mxu0 0.0
          %1686 = vmatpush1.msra.mxu0 0.0
          %1687 = vmatprep.subr.mxu0 0.0
          %1688 = vmatpush1.msra.mxu0 0.0
          %1689 = vmatprep.subr.mxu0 0.0
          %1690 = vmatpush1.msra.mxu0 0.0
          %1691 = vmatprep.subr.mxu0 0.0
          %1692 = vmatpush1.msra.mxu0 0.0
          %1693 = vmatprep.subr.mxu0 0.0
          %1694 = vmatpush1.msra.mxu0 0.0
          %1695 = vmatprep.mubr.f32.mxu0 0.0
          %1696 = vmatmul.mubr.f32.gmra.mrb[0].mxu0 %v1607
          %v1697 = vpop.f32.mrb[0].mxu0
          %v1698 = vadd.f32 %v1629, %v1697
          %v1699 = vpop.f32.mrb[0].mxu0
          %1700 = vdwg.mxu0
          %v1701 = vmax.f32 %v1698, 0.0
          %v1702 = vld [vmem:[#allocation15] sm:$0xff]
          %v1703 = vld [vmem:[#allocation15 + $0x8] sm:$0xff]
          %v1704 = vld [vmem:[#allocation15 + $0x10] sm:$0xff]
          %v1705 = vld [vmem:[#allocation15 + $0x18] sm:$0xff]
          %v1706 = vld [vmem:[#allocation15 + $0x20] sm:$0xff]
          %v1707 = vld [vmem:[#allocation15 + $0x28] sm:$0xff]
          %v1708 = vld [vmem:[#allocation15 + $0x30] sm:$0xff]
          %v1709 = vld [vmem:[#allocation15 + $0x38] sm:$0xff]
          %v1710 = vld [vmem:[#allocation15 + $0x40] sm:$0xff]
          %v1711 = vld [vmem:[#allocation15 + $0x48] sm:$0xff]
          %v1712 = vld [vmem:[#allocation15 + $0x50] sm:$0xff]
          %v1713 = vld [vmem:[#allocation15 + $0x58] sm:$0xff]
          %v1714 = vld [vmem:[#allocation15 + $0x60] sm:$0xff]
          %v1715 = vld [vmem:[#allocation15 + $0x68] sm:$0xff]
          %v1716 = vld [vmem:[#allocation15 + $0x70] sm:$0xff]
          %v1717 = vld [vmem:[#allocation15 + $0x78] sm:$0xff]
          %v1718 = vld [vmem:[%s9] sm:$0x1]
          %v1720 = vlaneseq
          %v1721 = vshrl.u32 %v1720, 7
          %v1722 = vsub.s32 0, %v1721
          %v1723 = vrot.slane %v1718, %v1722
          %1725 = vmatprep.subr.mxu0 0.0
          %1726 = vmatpush1.msra.mxu0 %v1702
          %1727 = vmatprep.subr.mxu0 0.0
          %1728 = vmatpush1.msra.mxu0 %v1703
          %1729 = vmatprep.subr.mxu0 0.0
          %1730 = vmatpush1.msra.mxu0 %v1704
          %1731 = vmatprep.subr.mxu0 0.0
          %1732 = vmatpush1.msra.mxu0 %v1705
          %1733 = vmatprep.subr.mxu0 0.0
          %1734 = vmatpush1.msra.mxu0 %v1706
          %1735 = vmatprep.subr.mxu0 0.0
          %1736 = vmatpush1.msra.mxu0 %v1707
          %1737 = vmatprep.subr.mxu0 0.0
          %1738 = vmatpush1.msra.mxu0 %v1708
          %1739 = vmatprep.subr.mxu0 0.0
          %1740 = vmatpush1.msra.mxu0 %v1709
          %1741 = vmatprep.subr.mxu0 0.0
          %1742 = vmatpush1.msra.mxu0 %v1710
          %1743 = vmatprep.subr.mxu0 0.0
          %1744 = vmatpush1.msra.mxu0 %v1711
          %1745 = vmatprep.subr.mxu0 0.0
          %1746 = vmatpush1.msra.mxu0 %v1712
          %1747 = vmatprep.subr.mxu0 0.0
          %1748 = vmatpush1.msra.mxu0 %v1713
          %1749 = vmatprep.subr.mxu0 0.0
          %1750 = vmatpush1.msra.mxu0 %v1714
          %1751 = vmatprep.subr.mxu0 0.0
          %1752 = vmatpush1.msra.mxu0 %v1715
          %1753 = vmatprep.subr.mxu0 0.0
          %1754 = vmatpush1.msra.mxu0 %v1716
          %1755 = vmatprep.subr.mxu0 0.0
          %1756 = vmatpush1.msra.mxu0 %v1717
          %1757 = vmatprep.subr.mxu0 0.0
          %1758 = vmatpush1.msra.mxu0 0.0
          %1759 = vmatprep.subr.mxu0 0.0
          %1760 = vmatpush1.msra.mxu0 0.0
          %1761 = vmatprep.subr.mxu0 0.0
          %1762 = vmatpush1.msra.mxu0 0.0
          %1763 = vmatprep.subr.mxu0 0.0
          %1764 = vmatpush1.msra.mxu0 0.0
          %1765 = vmatprep.subr.mxu0 0.0
          %1766 = vmatpush1.msra.mxu0 0.0
          %1767 = vmatprep.subr.mxu0 0.0
          %1768 = vmatpush1.msra.mxu0 0.0
          %1769 = vmatprep.subr.mxu0 0.0
          %1770 = vmatpush1.msra.mxu0 0.0
          %1771 = vmatprep.subr.mxu0 0.0
          %1772 = vmatpush1.msra.mxu0 0.0
          %1773 = vmatprep.subr.mxu0 0.0
          %1774 = vmatpush1.msra.mxu0 0.0
          %1775 = vmatprep.subr.mxu0 0.0
          %1776 = vmatpush1.msra.mxu0 0.0
          %1777 = vmatprep.subr.mxu0 0.0
          %1778 = vmatpush1.msra.mxu0 0.0
          %1779 = vmatprep.subr.mxu0 0.0
          %1780 = vmatpush1.msra.mxu0 0.0
          %1781 = vmatprep.subr.mxu0 0.0
          %1782 = vmatpush1.msra.mxu0 0.0
          %1783 = vmatprep.subr.mxu0 0.0
          %1784 = vmatpush1.msra.mxu0 0.0
          %1785 = vmatprep.subr.mxu0 0.0
          %1786 = vmatpush1.msra.mxu0 0.0
          %1787 = vmatprep.subr.mxu0 0.0
          %1788 = vmatpush1.msra.mxu0 0.0
          %1789 = vmatprep.mubr.f32.mxu0 0.0
          %1790 = vmatmul.mubr.f32.gmra.mrb[0].mxu0 %v1701
          %v1791 = vpop.f32.mrb[0].mxu0
          %v1792 = vadd.f32 %v1723, %v1791
          %v1793 = vpop.f32.mrb[0].mxu0
          %1794 = vdwg.mxu0
          %1795 = vst [vmem:[%s364] sm:$0xff] %v1792
        $region127: #{tpu_custom_call.1} parent=47 // pred_fallthru
          _
        %s1796 = sand.u32 %s211, 1
        %s1797 = scalar_lea.sflag [#allocation11], %s1796
        %s1798 = sand.u32 %s211, 1
        %s1799 = smul.addr %s1798, 8
        %s1800 = scalar_lea.vmem [#allocation17], %s1799
        // Predicated region
        $region128: #{tpu_custom_call.1} parent=47 // pred_check
          %p1801 = pneg %p221
        $region129: #{tpu_custom_call.1} parent=47 // pred_check_branch
          %1803 = sbr.rel (%p1801) target = $region131
        $region130: #{tpu_custom_call.1} parent=47 // pred_region
          %s1805 = ssub.s32 128, 128
          %1806 = vsyncadd %s1797, %s1805
          %s1807 = smul.addr %s41, 128
          %s1808 = scalar_lea.hbm %s10, %s1807
          %s1810 = sshll.u32 %s1800, 4
          %s1811 = int_to_ptr.vmem [resolvable:$true] %s1810
          %1813 = dma.vmem_to_hbm [thread:$0]  %s1811, 128, %s1808, %s1797
        $region131: #{tpu_custom_call.1} parent=47 // pred_fallthru
          _
      $region48: #{tpu_custom_call.1} parent=5 // pred_fallthru
        _
      %p1814 = scmp.le.s32.totalorder 2, %s32
      // Predicated region
      $region132: #{tpu_custom_call.1} parent=5 // pred_check
        %p1815 = pneg %p1814
      $region133: #{tpu_custom_call.1} parent=5 // pred_check_branch
        %1817 = sbr.rel (%p1815) target = $region135
      $region134: #{tpu_custom_call.1} parent=5 // pred_region
        %s1818 = ssub.s32 %s32, 2
        // Predicated region
        $region136: #{tpu_custom_call.1} parent=134 // pred_check
          %p1819 = pneg %p227
        $region137: #{tpu_custom_call.1} parent=134 // pred_check_branch
          %1821 = sbr.rel (%p1819) target = $region139
        $region138: #{tpu_custom_call.1} parent=134 // pred_region
          %s1822 = sand.u32 %s212, 1
          %s1823 = scalar_lea.sflag [#allocation11], %s1822
          %s1824 = sand.u32 %s212, 1
          %s1825 = smul.addr %s1824, 8
          %s1826 = scalar_lea.vmem [#allocation17], %s1825
          %1827 = dma.done %s1823, 128
        $region139: #{tpu_custom_call.1} parent=134 // pred_fallthru
          _
      $region135: #{tpu_custom_call.1} parent=5 // pred_fallthru
        _
    $region6: #{tpu_custom_call.1} parent=1 // loop_footer
      %s36 = sadd.s32 1, %s32
    $region7: #{tpu_custom_call.1} parent=1 // loop_footer_branch
      %31 = sbr.rel target = $region3
    $region8: #{tpu_custom_call.1} parent=1 // loop_exit
      _
    %1828 = vsyncpa [#allocation10], 1
    %s1829 = scalar_lea.sflag [#allocation10], 1
    %1830 = vsyncpa %s1829, 1
    %1831 = vsyncpa [#allocation13], 1
    %1832 = vsyncpa [#allocation16], 1
    %1833 = vsyncpa [#allocation11], 1
    %s1834 = scalar_lea.sflag [#allocation11], 1
    %1835 = vsyncpa %s1834, 1
  %1836 = vsyncmov [#allocation5]
  %s1837 = vpop.sfrf %1836
  %p1838 = scmp.eq.s32.totalorder %s1837, 0
  %p1839 = pneg %p1838
  %1841 = shalt.err (%p1839)
  %s1842 = scalar_lea.sflag [#allocation5], 1
  %1843 = vsyncmov %s1842
  %s1844 = vpop.sfrf %1843
  %p1845 = scmp.eq.s32.totalorder %s1844, 0
  %p1846 = pneg %p1845
  %1848 = shalt.err (%p1846)

</llo_original>
